<compile_context>
chip_gen: v5e
topology: v5e:2x2
jax: 0.10.0
libtpu: 0.0.40
codegen_flags: <defaults>
</compile_context>

<pallas_src>
import math

import jax
import jax.numpy as jnp
from jax import lax
from jax.experimental import pallas as pl
from jax.experimental.pallas import tpu as pltpu

# ----- small, module-consistent sizes -----
B = 2          # batch
S = 8          # sequence length
R = B * S      # rows: batch folded onto sublanes (16)
D = 128        # d_model
H = 4          # heads
DK = D // H    # d_k = 32
M = 256        # feed-forward middle_dim
LN_EPS = 1e-5  # PyTorch nn.LayerNorm default


def _layernorm(x, gamma, beta):
    # x: (R, D) f32; gamma/beta: (1, D) f32
    mean = jnp.mean(x, axis=-1, keepdims=True)
    var = jnp.mean((x - mean) ** 2, axis=-1, keepdims=True)   # biased, like PyTorch
    inv = lax.rsqrt(var + LN_EPS)
    return (x - mean) * inv * gamma + beta


def encoder_layer_kernel(x_ref, bias_ref, wqkv_ref, wc_ref, w1_ref, w2_ref,
                         vec_ref, o_ref):
    f32 = jnp.float32
    bf16 = jnp.bfloat16

    x = x_ref[...]                       # (R, D) f32
    x_bf = x.astype(bf16)

    # ---- packed bias / LayerNorm vectors: one (8, 3D) slab, static row slices ----
    vecs = vec_ref[...]
    bqkv = vecs[0:1, :]                  # (1, 3D)
    b1 = vecs[1:2, :M]                   # (1, M)
    bc = vecs[2:3, :D]
    b2 = vecs[3:4, :D]
    g1 = vecs[4:5, :D]
    be1 = vecs[5:6, :D]
    g2 = vecs[6:7, :D]
    be2 = vecs[7:8, :D]

    # ---- fused Q/K/V projection: single bf16 MXU push, f32 accumulation ----
    qkv = jnp.dot(x_bf, wqkv_ref[...], preferred_element_type=f32) + bqkv
    qkv_bf = qkv.astype(bf16)
    q_bf = qkv_bf[:, 0:D]                # 128-aligned lane slices: free
    k_bf = qkv_bf[:, D:2 * D]
    v_bf = qkv_bf[:, 2 * D:3 * D]

    scale = f32(1.0 / math.sqrt(DK))
    bias = bias_ref[...]                 # (R, R) f32: key mask + cross-batch -1e9
    wc = wc_ref[...]                     # (D, D) bf16

    # ---- multi-head attention with the batch folded onto the sublane axis ----
    attn = jnp.zeros((R, D), f32)
    for h in range(H):                   # static tiny loop over heads
        lo = h * DK
        qh = q_bf[:, lo:lo + DK]         # (R, DK)
        kh = k_bf[:, lo:lo + DK]
        vh = v_bf[:, lo:lo + DK]
        # q @ k^T with the transpose absorbed into the contraction dims
        scores = lax.dot_general(
            qh, kh, (((1,), (1,)), ((), ())),
            preferred_element_type=f32) * scale + bias      # (R, R) f32
        smax = jnp.max(scores, axis=-1, keepdims=True)
        e = jnp.exp(scores - smax)
        p = e * pl.reciprocal(jnp.sum(e, axis=-1, keepdims=True), approx=False)
        ctx = jnp.dot(p.astype(bf16), vh, preferred_element_type=f32)   # (R, DK)
        # context @ Wc == sum_h ctx_h @ Wc[h*DK:(h+1)*DK, :]  (no lane concat)
        attn = attn + jnp.dot(ctx.astype(bf16), wc[lo:lo + DK, :],
                              preferred_element_type=f32)
    attn = attn + bc                     # (R, D) f32

    # ---- residual + LayerNorm1 (dropout1 = identity in eval) ----
    y = _layernorm(x + attn, g1, be1)

    # ---- feed forward (internal dropout = identity in eval) ----
    y_bf = y.astype(bf16)
    h1 = jnp.maximum(
        jnp.dot(y_bf, w1_ref[...], preferred_element_type=f32) + b1, 0.0)
    ff = jnp.dot(h1.astype(bf16), w2_ref[...], preferred_element_type=f32) + b2

    # ---- residual + LayerNorm2 (dropout2 = identity in eval) ----
    o_ref[...] = _layernorm(y + ff, g2, be2).astype(o_ref.dtype)


def encoder_layer(x, mask, params):
    (wq, bq, wk, bk, wv, bv, wc, bc, w1, b1, w2, b2, g1, be1, g2, be2) = params
    bf16 = jnp.bfloat16
    f32 = jnp.float32

    # ---- fused QKV weight + bf16 weights at the boundary ----
    wqkv = jnp.concatenate([wq, wk, wv], axis=1).astype(bf16)       # (D, 3D)
    wc_b, w1_b, w2_b = wc.astype(bf16), w1.astype(bf16), w2.astype(bf16)

    # ---- pack all tiny bias / LayerNorm vectors into one (8, 3D) f32 slab ----
    vecs = jnp.zeros((8, 3 * D), f32)
    vecs = vecs.at[0, :].set(jnp.concatenate(
        [bq.reshape(-1), bk.reshape(-1), bv.reshape(-1)]))
    vecs = vecs.at[1, :M].set(b1.reshape(-1))
    vecs = vecs.at[2, :D].set(bc.reshape(-1))
    vecs = vecs.at[3, :D].set(b2.reshape(-1))
    vecs = vecs.at[4, :D].set(g1.reshape(-1))
    vecs = vecs.at[5, :D].set(be1.reshape(-1))
    vecs = vecs.at[6, :D].set(g2.reshape(-1))
    vecs = vecs.at[7, :D].set(be2.reshape(-1))

    # ---- additive attention bias precomputed in the wrapper ----
    # key mask (1=keep, 0=mask) -> 0 / -1e9 per key column, plus -1e9 on the
    # cross-batch 8x8 blocks (batch folded onto the sublane axis in-kernel).
    key_bias = jnp.where(mask.reshape(B, S) == 0, f32(-1e9), f32(0.0)).reshape(-1)
    row_batch = jnp.arange(R) // S
    same_batch = row_batch[:, None] == row_batch[None, :]
    attn_bias = jnp.where(same_batch, key_bias[None, :], f32(-1e9))  # (R, R)

    x_flat = x.reshape(R, D)

    vmem = pl.BlockSpec(memory_space=pltpu.MemorySpace.VMEM)
    out = pl.pallas_call(
        encoder_layer_kernel,
        out_shape=jax.ShapeDtypeStruct((R, D), jnp.float32),
        in_specs=[vmem] * 7,
        out_specs=vmem,
    )(x_flat, attn_bias, wqkv, wc_b, w1_b, w2_b, vecs)
    return out.reshape(B, S, D)


def reference(x, mask, params):
    """Pure-JAX f32 reference mirroring the PyTorch forward (eval mode)."""
    (wq, bq, wk, bk, wv, bv, wc, bc, w1, b1, w2, b2, g1, be1, g2, be2) = params

    def ln(z, g, b):
        mu = jnp.mean(z, -1, keepdims=True)
        var = jnp.mean((z - mu) ** 2, -1, keepdims=True)
        return (z - mu) / jnp.sqrt(var + LN_EPS) * g + b

    q = x @ wq + bq
    k = x @ wk + bk
    v = x @ wv + bv
    q = q.reshape(B, S, H, DK).transpose(0, 2, 1, 3)
    k = k.reshape(B, S, H, DK).transpose(0, 2, 1, 3)
    v = v.reshape(B, S, H, DK).transpose(0, 2, 1, 3)
    scores = jnp.einsum("bhqd,bhkd->bhqk", q, k) / math.sqrt(DK)
    scores = jnp.where(mask[:, None, :, :] == 0, -1e9, scores)
    w = jax.nn.softmax(scores, axis=-1)
    ctx = jnp.einsum("bhqk,bhkd->bhqd", w, v).transpose(0, 2, 1, 3).reshape(B, S, D)
    attn = ctx @ wc + bc
    y = ln(x + attn, g1, be1)
    ff = jnp.maximum(y @ w1 + b1, 0.0) @ w2 + b2
    return ln(y + ff, g2, be2)


def make_params(key):
    ks = jax.random.split(key, 12)
    s = 0.05
    wq = jax.random.normal(ks[0], (D, D), jnp.float32) * s
    bq = jax.random.normal(ks[1], (1, D), jnp.float32) * s
    wk = jax.random.normal(ks[2], (D, D), jnp.float32) * s
    bk = jax.random.normal(ks[3], (1, D), jnp.float32) * s
    wv = jax.random.normal(ks[4], (D, D), jnp.float32) * s
    bv = jax.random.normal(ks[5], (1, D), jnp.float32) * s
    wc = jax.random.normal(ks[6], (D, D), jnp.float32) * s
    bc = jax.random.normal(ks[7], (1, D), jnp.float32) * s
    w1 = jax.random.normal(ks[8], (D, M), jnp.float32) * s
    b1 = jax.random.normal(ks[9], (1, M), jnp.float32) * s
    w2 = jax.random.normal(ks[10], (M, D), jnp.float32) * s
    b2 = jax.random.normal(ks[11], (1, D), jnp.float32) * s
    g1 = jnp.ones((1, D), jnp.float32)
    be1 = jnp.zeros((1, D), jnp.float32)
    g2 = jnp.ones((1, D), jnp.float32)
    be2 = jnp.zeros((1, D), jnp.float32)
    return (wq, bq, wk, bk, wv, bv, wc, bc, w1, b1, w2, b2, g1, be1, g2, be2)


if __name__ == "__main__":
    key = jax.random.PRNGKey(0)
    kx, kp = jax.random.split(key)
    x = jax.random.normal(kx, (B, S, D), jnp.float32)

    # mask: (B, 1, S); batch 0 attends to all positions, batch 1 masks the last 2.
    mask = jnp.ones((B, 1, S), jnp.float32)
    mask = mask.at[1, 0, S - 2:].set(0.0)

    params = make_params(kp)

    out = encoder_layer(x, mask, params)
    out = jax.block_until_ready(out)

    ref = reference(x, mask, params)
    assert out.shape == (B, S, D)
    # bf16 matmul operands/weights (f32 accumulation) -> loosened tolerance.
    max_diff = float(jnp.max(jnp.abs(out - ref)))
    assert jnp.allclose(out, ref, atol=3e-2, rtol=3e-2), max_diff

    print("KERNEL_OK")
</pallas_src>

<mosaic_0001>
module attributes {stable_mosaic.version = 11 : i64} {
  func.func @encoder_layer_kernel(%arg0: memref<16x128xf32, #tpu.memory_space<vmem>>, %arg1: memref<16x16xf32, #tpu.memory_space<vmem>>, %arg2: memref<128x384xbf16, #tpu.memory_space<vmem>>, %arg3: memref<128x128xbf16, #tpu.memory_space<vmem>>, %arg4: memref<128x256xbf16, #tpu.memory_space<vmem>>, %arg5: memref<256x128xbf16, #tpu.memory_space<vmem>>, %arg6: memref<8x384xf32, #tpu.memory_space<vmem>>, %arg7: memref<16x128xf32, #tpu.memory_space<vmem>>) attributes {dimension_semantics = [], scalar_prefetch = 0 : i64, scratch_operands = 0 : i64, tpu.core_type = #tpu.core_type<tc>} {
    %c0 = arith.constant 0 : index
    %c0_0 = arith.constant 0 : index
    %0 = vector.load %arg0[%c0, %c0_0] : memref<16x128xf32, #tpu.memory_space<vmem>>, vector<16x128xf32>
    %1 = arith.truncf %0 : vector<16x128xf32> to vector<16x128xbf16>
    %c0_1 = arith.constant 0 : index
    %c0_2 = arith.constant 0 : index
    %2 = vector.load %arg6[%c0_1, %c0_2] : memref<8x384xf32, #tpu.memory_space<vmem>>, vector<8x384xf32>
    %3 = vector.extract_strided_slice %2 {offsets = [0, 0], sizes = [1, 384], strides = [1, 1]} : vector<8x384xf32> to vector<1x384xf32>
    %4 = vector.extract_strided_slice %2 {offsets = [1, 0], sizes = [1, 256], strides = [1, 1]} : vector<8x384xf32> to vector<1x256xf32>
    %5 = vector.extract_strided_slice %2 {offsets = [2, 0], sizes = [1, 128], strides = [1, 1]} : vector<8x384xf32> to vector<1x128xf32>
    %6 = vector.extract_strided_slice %2 {offsets = [3, 0], sizes = [1, 128], strides = [1, 1]} : vector<8x384xf32> to vector<1x128xf32>
    %7 = vector.extract_strided_slice %2 {offsets = [4, 0], sizes = [1, 128], strides = [1, 1]} : vector<8x384xf32> to vector<1x128xf32>
    %8 = vector.extract_strided_slice %2 {offsets = [5, 0], sizes = [1, 128], strides = [1, 1]} : vector<8x384xf32> to vector<1x128xf32>
    %9 = vector.extract_strided_slice %2 {offsets = [6, 0], sizes = [1, 128], strides = [1, 1]} : vector<8x384xf32> to vector<1x128xf32>
    %10 = vector.extract_strided_slice %2 {offsets = [7, 0], sizes = [1, 128], strides = [1, 1]} : vector<8x384xf32> to vector<1x128xf32>
    %c0_3 = arith.constant 0 : index
    %c0_4 = arith.constant 0 : index
    %11 = vector.load %arg2[%c0_3, %c0_4] : memref<128x384xbf16, #tpu.memory_space<vmem>>, vector<128x384xbf16>
    %cst = arith.constant dense<0.000000e+00> : vector<16x384xf32>
    %12 = tpu.matmul %1, %11, %cst {dimension_numbers = #tpu.dot_dimension_numbers<[1], [0], [0], [1], [0, 0, 1, 1], [], []>} : vector<16x128xbf16>, vector<128x384xbf16>, vector<16x384xf32> -> vector<16x384xf32>
    %13 = vector.broadcast %3 : vector<1x384xf32> to vector<16x384xf32>
    %14 = arith.addf %12, %13 : vector<16x384xf32>
    %15 = arith.truncf %14 : vector<16x384xf32> to vector<16x384xbf16>
    %16 = vector.extract_strided_slice %15 {offsets = [0, 0], sizes = [16, 128], strides = [1, 1]} : vector<16x384xbf16> to vector<16x128xbf16>
    %17 = vector.extract_strided_slice %15 {offsets = [0, 128], sizes = [16, 128], strides = [1, 1]} : vector<16x384xbf16> to vector<16x128xbf16>
    %18 = vector.extract_strided_slice %15 {offsets = [0, 256], sizes = [16, 128], strides = [1, 1]} : vector<16x384xbf16> to vector<16x128xbf16>
    %c0_5 = arith.constant 0 : index
    %c0_6 = arith.constant 0 : index
    %19 = vector.load %arg1[%c0_5, %c0_6] : memref<16x16xf32, #tpu.memory_space<vmem>>, vector<16x16xf32>
    %c0_7 = arith.constant 0 : index
    %c0_8 = arith.constant 0 : index
    %20 = vector.load %arg3[%c0_7, %c0_8] : memref<128x128xbf16, #tpu.memory_space<vmem>>, vector<128x128xbf16>
    %cst_9 = arith.constant 0.000000e+00 : f32
    %21 = vector.broadcast %cst_9 : f32 to vector<16x128xf32>
    %22 = vector.extract_strided_slice %16 {offsets = [0, 0], sizes = [16, 32], strides = [1, 1]} : vector<16x128xbf16> to vector<16x32xbf16>
    %23 = vector.extract_strided_slice %17 {offsets = [0, 0], sizes = [16, 32], strides = [1, 1]} : vector<16x128xbf16> to vector<16x32xbf16>
    %24 = vector.extract_strided_slice %18 {offsets = [0, 0], sizes = [16, 32], strides = [1, 1]} : vector<16x128xbf16> to vector<16x32xbf16>
    %cst_10 = arith.constant dense<0.000000e+00> : vector<16x16xf32>
    %25 = tpu.matmul %22, %23, %cst_10 {dimension_numbers = #tpu.dot_dimension_numbers<[1], [1], [0], [0], [0, 0, 1, 0], [], []>} : vector<16x32xbf16>, vector<16x32xbf16>, vector<16x16xf32> -> vector<16x16xf32>
    %cst_11 = arith.constant 0.176776692 : f32
    %26 = vector.broadcast %cst_11 : f32 to vector<16x16xf32>
    %27 = arith.mulf %25, %26 : vector<16x16xf32>
    %28 = arith.addf %27, %19 : vector<16x16xf32>
    %cst_12 = arith.constant dense<0xFF800000> : vector<16xf32>
    %29 = vector.multi_reduction <maximumf>, %28, %cst_12 [1] : vector<16x16xf32> to vector<16xf32>
    %30 = vector.shape_cast %29 : vector<16xf32> to vector<16x1xf32>
    %31 = vector.broadcast %30 : vector<16x1xf32> to vector<16x16xf32>
    %32 = arith.subf %28, %31 : vector<16x16xf32>
    %33 = math.exp %32 : vector<16x16xf32>
    %cst_13 = arith.constant dense<0.000000e+00> : vector<16xf32>
    %34 = vector.multi_reduction <add>, %33, %cst_13 [1] : vector<16x16xf32> to vector<16xf32>
    %35 = vector.shape_cast %34 : vector<16xf32> to vector<16x1xf32>
    %36 = tpu.reciprocal %35 : vector<16x1xf32> -> vector<16x1xf32>
    %37 = vector.broadcast %36 : vector<16x1xf32> to vector<16x16xf32>
    %38 = arith.mulf %33, %37 : vector<16x16xf32>
    %39 = arith.truncf %38 : vector<16x16xf32> to vector<16x16xbf16>
    %cst_14 = arith.constant dense<0.000000e+00> : vector<16x32xf32>
    %40 = tpu.matmul %39, %24, %cst_14 {dimension_numbers = #tpu.dot_dimension_numbers<[1], [0], [0], [1], [0, 0, 1, 1], [], []>} : vector<16x16xbf16>, vector<16x32xbf16>, vector<16x32xf32> -> vector<16x32xf32>
    %41 = arith.truncf %40 : vector<16x32xf32> to vector<16x32xbf16>
    %42 = vector.extract_strided_slice %20 {offsets = [0, 0], sizes = [32, 128], strides = [1, 1]} : vector<128x128xbf16> to vector<32x128xbf16>
    %cst_15 = arith.constant dense<0.000000e+00> : vector<16x128xf32>
    %43 = tpu.matmul %41, %42, %cst_15 {dimension_numbers = #tpu.dot_dimension_numbers<[1], [0], [0], [1], [0, 0, 1, 1], [], []>} : vector<16x32xbf16>, vector<32x128xbf16>, vector<16x128xf32> -> vector<16x128xf32>
    %44 = arith.addf %21, %43 : vector<16x128xf32>
    %45 = vector.extract_strided_slice %16 {offsets = [0, 32], sizes = [16, 32], strides = [1, 1]} : vector<16x128xbf16> to vector<16x32xbf16>
    %46 = vector.extract_strided_slice %17 {offsets = [0, 32], sizes = [16, 32], strides = [1, 1]} : vector<16x128xbf16> to vector<16x32xbf16>
    %47 = vector.extract_strided_slice %18 {offsets = [0, 32], sizes = [16, 32], strides = [1, 1]} : vector<16x128xbf16> to vector<16x32xbf16>
    %cst_16 = arith.constant dense<0.000000e+00> : vector<16x16xf32>
    %48 = tpu.matmul %45, %46, %cst_16 {dimension_numbers = #tpu.dot_dimension_numbers<[1], [1], [0], [0], [0, 0, 1, 0], [], []>} : vector<16x32xbf16>, vector<16x32xbf16>, vector<16x16xf32> -> vector<16x16xf32>
    %cst_17 = arith.constant 0.176776692 : f32
    %49 = vector.broadcast %cst_17 : f32 to vector<16x16xf32>
    %50 = arith.mulf %48, %49 : vector<16x16xf32>
    %51 = arith.addf %50, %19 : vector<16x16xf32>
    %cst_18 = arith.constant dense<0xFF800000> : vector<16xf32>
    %52 = vector.multi_reduction <maximumf>, %51, %cst_18 [1] : vector<16x16xf32> to vector<16xf32>
    %53 = vector.shape_cast %52 : vector<16xf32> to vector<16x1xf32>
    %54 = vector.broadcast %53 : vector<16x1xf32> to vector<16x16xf32>
    %55 = arith.subf %51, %54 : vector<16x16xf32>
    %56 = math.exp %55 : vector<16x16xf32>
    %cst_19 = arith.constant dense<0.000000e+00> : vector<16xf32>
    %57 = vector.multi_reduction <add>, %56, %cst_19 [1] : vector<16x16xf32> to vector<16xf32>
    %58 = vector.shape_cast %57 : vector<16xf32> to vector<16x1xf32>
    %59 = tpu.reciprocal %58 : vector<16x1xf32> -> vector<16x1xf32>
    %60 = vector.broadcast %59 : vector<16x1xf32> to vector<16x16xf32>
    %61 = arith.mulf %56, %60 : vector<16x16xf32>
    %62 = arith.truncf %61 : vector<16x16xf32> to vector<16x16xbf16>
    %cst_20 = arith.constant dense<0.000000e+00> : vector<16x32xf32>
    %63 = tpu.matmul %62, %47, %cst_20 {dimension_numbers = #tpu.dot_dimension_numbers<[1], [0], [0], [1], [0, 0, 1, 1], [], []>} : vector<16x16xbf16>, vector<16x32xbf16>, vector<16x32xf32> -> vector<16x32xf32>
    %64 = arith.truncf %63 : vector<16x32xf32> to vector<16x32xbf16>
    %65 = vector.extract_strided_slice %20 {offsets = [32, 0], sizes = [32, 128], strides = [1, 1]} : vector<128x128xbf16> to vector<32x128xbf16>
    %cst_21 = arith.constant dense<0.000000e+00> : vector<16x128xf32>
    %66 = tpu.matmul %64, %65, %cst_21 {dimension_numbers = #tpu.dot_dimension_numbers<[1], [0], [0], [1], [0, 0, 1, 1], [], []>} : vector<16x32xbf16>, vector<32x128xbf16>, vector<16x128xf32> -> vector<16x128xf32>
    %67 = arith.addf %44, %66 : vector<16x128xf32>
    %68 = vector.extract_strided_slice %16 {offsets = [0, 64], sizes = [16, 32], strides = [1, 1]} : vector<16x128xbf16> to vector<16x32xbf16>
    %69 = vector.extract_strided_slice %17 {offsets = [0, 64], sizes = [16, 32], strides = [1, 1]} : vector<16x128xbf16> to vector<16x32xbf16>
    %70 = vector.extract_strided_slice %18 {offsets = [0, 64], sizes = [16, 32], strides = [1, 1]} : vector<16x128xbf16> to vector<16x32xbf16>
    %cst_22 = arith.constant dense<0.000000e+00> : vector<16x16xf32>
    %71 = tpu.matmul %68, %69, %cst_22 {dimension_numbers = #tpu.dot_dimension_numbers<[1], [1], [0], [0], [0, 0, 1, 0], [], []>} : vector<16x32xbf16>, vector<16x32xbf16>, vector<16x16xf32> -> vector<16x16xf32>
    %cst_23 = arith.constant 0.176776692 : f32
    %72 = vector.broadcast %cst_23 : f32 to vector<16x16xf32>
    %73 = arith.mulf %71, %72 : vector<16x16xf32>
    %74 = arith.addf %73, %19 : vector<16x16xf32>
    %cst_24 = arith.constant dense<0xFF800000> : vector<16xf32>
    %75 = vector.multi_reduction <maximumf>, %74, %cst_24 [1] : vector<16x16xf32> to vector<16xf32>
    %76 = vector.shape_cast %75 : vector<16xf32> to vector<16x1xf32>
    %77 = vector.broadcast %76 : vector<16x1xf32> to vector<16x16xf32>
    %78 = arith.subf %74, %77 : vector<16x16xf32>
    %79 = math.exp %78 : vector<16x16xf32>
    %cst_25 = arith.constant dense<0.000000e+00> : vector<16xf32>
    %80 = vector.multi_reduction <add>, %79, %cst_25 [1] : vector<16x16xf32> to vector<16xf32>
    %81 = vector.shape_cast %80 : vector<16xf32> to vector<16x1xf32>
    %82 = tpu.reciprocal %81 : vector<16x1xf32> -> vector<16x1xf32>
    %83 = vector.broadcast %82 : vector<16x1xf32> to vector<16x16xf32>
    %84 = arith.mulf %79, %83 : vector<16x16xf32>
    %85 = arith.truncf %84 : vector<16x16xf32> to vector<16x16xbf16>
    %cst_26 = arith.constant dense<0.000000e+00> : vector<16x32xf32>
    %86 = tpu.matmul %85, %70, %cst_26 {dimension_numbers = #tpu.dot_dimension_numbers<[1], [0], [0], [1], [0, 0, 1, 1], [], []>} : vector<16x16xbf16>, vector<16x32xbf16>, vector<16x32xf32> -> vector<16x32xf32>
    %87 = arith.truncf %86 : vector<16x32xf32> to vector<16x32xbf16>
    %88 = vector.extract_strided_slice %20 {offsets = [64, 0], sizes = [32, 128], strides = [1, 1]} : vector<128x128xbf16> to vector<32x128xbf16>
    %cst_27 = arith.constant dense<0.000000e+00> : vector<16x128xf32>
    %89 = tpu.matmul %87, %88, %cst_27 {dimension_numbers = #tpu.dot_dimension_numbers<[1], [0], [0], [1], [0, 0, 1, 1], [], []>} : vector<16x32xbf16>, vector<32x128xbf16>, vector<16x128xf32> -> vector<16x128xf32>
    %90 = arith.addf %67, %89 : vector<16x128xf32>
    %91 = vector.extract_strided_slice %16 {offsets = [0, 96], sizes = [16, 32], strides = [1, 1]} : vector<16x128xbf16> to vector<16x32xbf16>
    %92 = vector.extract_strided_slice %17 {offsets = [0, 96], sizes = [16, 32], strides = [1, 1]} : vector<16x128xbf16> to vector<16x32xbf16>
    %93 = vector.extract_strided_slice %18 {offsets = [0, 96], sizes = [16, 32], strides = [1, 1]} : vector<16x128xbf16> to vector<16x32xbf16>
    %cst_28 = arith.constant dense<0.000000e+00> : vector<16x16xf32>
    %94 = tpu.matmul %91, %92, %cst_28 {dimension_numbers = #tpu.dot_dimension_numbers<[1], [1], [0], [0], [0, 0, 1, 0], [], []>} : vector<16x32xbf16>, vector<16x32xbf16>, vector<16x16xf32> -> vector<16x16xf32>
    %cst_29 = arith.constant 0.176776692 : f32
    %95 = vector.broadcast %cst_29 : f32 to vector<16x16xf32>
    %96 = arith.mulf %94, %95 : vector<16x16xf32>
    %97 = arith.addf %96, %19 : vector<16x16xf32>
    %cst_30 = arith.constant dense<0xFF800000> : vector<16xf32>
    %98 = vector.multi_reduction <maximumf>, %97, %cst_30 [1] : vector<16x16xf32> to vector<16xf32>
    %99 = vector.shape_cast %98 : vector<16xf32> to vector<16x1xf32>
    %100 = vector.broadcast %99 : vector<16x1xf32> to vector<16x16xf32>
    %101 = arith.subf %97, %100 : vector<16x16xf32>
    %102 = math.exp %101 : vector<16x16xf32>
    %cst_31 = arith.constant dense<0.000000e+00> : vector<16xf32>
    %103 = vector.multi_reduction <add>, %102, %cst_31 [1] : vector<16x16xf32> to vector<16xf32>
    %104 = vector.shape_cast %103 : vector<16xf32> to vector<16x1xf32>
    %105 = tpu.reciprocal %104 : vector<16x1xf32> -> vector<16x1xf32>
    %106 = vector.broadcast %105 : vector<16x1xf32> to vector<16x16xf32>
    %107 = arith.mulf %102, %106 : vector<16x16xf32>
    %108 = arith.truncf %107 : vector<16x16xf32> to vector<16x16xbf16>
    %cst_32 = arith.constant dense<0.000000e+00> : vector<16x32xf32>
    %109 = tpu.matmul %108, %93, %cst_32 {dimension_numbers = #tpu.dot_dimension_numbers<[1], [0], [0], [1], [0, 0, 1, 1], [], []>} : vector<16x16xbf16>, vector<16x32xbf16>, vector<16x32xf32> -> vector<16x32xf32>
    %110 = arith.truncf %109 : vector<16x32xf32> to vector<16x32xbf16>
    %111 = vector.extract_strided_slice %20 {offsets = [96, 0], sizes = [32, 128], strides = [1, 1]} : vector<128x128xbf16> to vector<32x128xbf16>
    %cst_33 = arith.constant dense<0.000000e+00> : vector<16x128xf32>
    %112 = tpu.matmul %110, %111, %cst_33 {dimension_numbers = #tpu.dot_dimension_numbers<[1], [0], [0], [1], [0, 0, 1, 1], [], []>} : vector<16x32xbf16>, vector<32x128xbf16>, vector<16x128xf32> -> vector<16x128xf32>
    %113 = arith.addf %90, %112 : vector<16x128xf32>
    %114 = vector.broadcast %5 : vector<1x128xf32> to vector<16x128xf32>
    %115 = arith.addf %113, %114 : vector<16x128xf32>
    %116 = arith.addf %0, %115 : vector<16x128xf32>
    %cst_34 = arith.constant dense<0.000000e+00> : vector<16xf32>
    %117 = vector.multi_reduction <add>, %116, %cst_34 [1] : vector<16x128xf32> to vector<16xf32>
    %118 = vector.shape_cast %117 : vector<16xf32> to vector<16x1xf32>
    %cst_35 = arith.constant 1.280000e+02 : f32
    %119 = vector.broadcast %cst_35 : f32 to vector<16x1xf32>
    %120 = arith.divf %118, %119 : vector<16x1xf32>
    %121 = vector.broadcast %120 : vector<16x1xf32> to vector<16x128xf32>
    %122 = arith.subf %116, %121 : vector<16x128xf32>
    %123 = arith.mulf %122, %122 : vector<16x128xf32>
    %cst_36 = arith.constant dense<0.000000e+00> : vector<16xf32>
    %124 = vector.multi_reduction <add>, %123, %cst_36 [1] : vector<16x128xf32> to vector<16xf32>
    %125 = vector.shape_cast %124 : vector<16xf32> to vector<16x1xf32>
    %cst_37 = arith.constant 1.280000e+02 : f32
    %126 = vector.broadcast %cst_37 : f32 to vector<16x1xf32>
    %127 = arith.divf %125, %126 : vector<16x1xf32>
    %cst_38 = arith.constant 9.99999974E-6 : f32
    %128 = vector.broadcast %cst_38 : f32 to vector<16x1xf32>
    %129 = arith.addf %127, %128 : vector<16x1xf32>
    %130 = math.rsqrt %129 : vector<16x1xf32>
    %131 = vector.broadcast %120 : vector<16x1xf32> to vector<16x128xf32>
    %132 = arith.subf %116, %131 : vector<16x128xf32>
    %133 = vector.broadcast %130 : vector<16x1xf32> to vector<16x128xf32>
    %134 = arith.mulf %132, %133 : vector<16x128xf32>
    %135 = vector.broadcast %7 : vector<1x128xf32> to vector<16x128xf32>
    %136 = arith.mulf %134, %135 : vector<16x128xf32>
    %137 = vector.broadcast %8 : vector<1x128xf32> to vector<16x128xf32>
    %138 = arith.addf %136, %137 : vector<16x128xf32>
    %139 = arith.truncf %138 : vector<16x128xf32> to vector<16x128xbf16>
    %c0_39 = arith.constant 0 : index
    %c0_40 = arith.constant 0 : index
    %140 = vector.load %arg4[%c0_39, %c0_40] : memref<128x256xbf16, #tpu.memory_space<vmem>>, vector<128x256xbf16>
    %cst_41 = arith.constant dense<0.000000e+00> : vector<16x256xf32>
    %141 = tpu.matmul %139, %140, %cst_41 {dimension_numbers = #tpu.dot_dimension_numbers<[1], [0], [0], [1], [0, 0, 1, 1], [], []>} : vector<16x128xbf16>, vector<128x256xbf16>, vector<16x256xf32> -> vector<16x256xf32>
    %142 = vector.broadcast %4 : vector<1x256xf32> to vector<16x256xf32>
    %143 = arith.addf %141, %142 : vector<16x256xf32>
    %cst_42 = arith.constant 0.000000e+00 : f32
    %144 = vector.broadcast %cst_42 : f32 to vector<16x256xf32>
    %145 = arith.maximumf %143, %144 : vector<16x256xf32>
    %146 = arith.truncf %145 : vector<16x256xf32> to vector<16x256xbf16>
    %c0_43 = arith.constant 0 : index
    %c0_44 = arith.constant 0 : index
    %147 = vector.load %arg5[%c0_43, %c0_44] : memref<256x128xbf16, #tpu.memory_space<vmem>>, vector<256x128xbf16>
    %cst_45 = arith.constant dense<0.000000e+00> : vector<16x128xf32>
    %148 = tpu.matmul %146, %147, %cst_45 {dimension_numbers = #tpu.dot_dimension_numbers<[1], [0], [0], [1], [0, 0, 1, 1], [], []>} : vector<16x256xbf16>, vector<256x128xbf16>, vector<16x128xf32> -> vector<16x128xf32>
    %149 = vector.broadcast %6 : vector<1x128xf32> to vector<16x128xf32>
    %150 = arith.addf %148, %149 : vector<16x128xf32>
    %151 = arith.addf %138, %150 : vector<16x128xf32>
    %cst_46 = arith.constant dense<0.000000e+00> : vector<16xf32>
    %152 = vector.multi_reduction <add>, %151, %cst_46 [1] : vector<16x128xf32> to vector<16xf32>
    %153 = vector.shape_cast %152 : vector<16xf32> to vector<16x1xf32>
    %cst_47 = arith.constant 1.280000e+02 : f32
    %154 = vector.broadcast %cst_47 : f32 to vector<16x1xf32>
    %155 = arith.divf %153, %154 : vector<16x1xf32>
    %156 = vector.broadcast %155 : vector<16x1xf32> to vector<16x128xf32>
    %157 = arith.subf %151, %156 : vector<16x128xf32>
    %158 = arith.mulf %157, %157 : vector<16x128xf32>
    %cst_48 = arith.constant dense<0.000000e+00> : vector<16xf32>
    %159 = vector.multi_reduction <add>, %158, %cst_48 [1] : vector<16x128xf32> to vector<16xf32>
    %160 = vector.shape_cast %159 : vector<16xf32> to vector<16x1xf32>
    %cst_49 = arith.constant 1.280000e+02 : f32
    %161 = vector.broadcast %cst_49 : f32 to vector<16x1xf32>
    %162 = arith.divf %160, %161 : vector<16x1xf32>
    %cst_50 = arith.constant 9.99999974E-6 : f32
    %163 = vector.broadcast %cst_50 : f32 to vector<16x1xf32>
    %164 = arith.addf %162, %163 : vector<16x1xf32>
    %165 = math.rsqrt %164 : vector<16x1xf32>
    %166 = vector.broadcast %155 : vector<16x1xf32> to vector<16x128xf32>
    %167 = arith.subf %151, %166 : vector<16x128xf32>
    %168 = vector.broadcast %165 : vector<16x1xf32> to vector<16x128xf32>
    %169 = arith.mulf %167, %168 : vector<16x128xf32>
    %170 = vector.broadcast %9 : vector<1x128xf32> to vector<16x128xf32>
    %171 = arith.mulf %169, %170 : vector<16x128xf32>
    %172 = vector.broadcast %10 : vector<1x128xf32> to vector<16x128xf32>
    %173 = arith.addf %171, %172 : vector<16x128xf32>
    %c0_51 = arith.constant 0 : index
    %c0_52 = arith.constant 0 : index
    %174 = vector.load %arg7[%c0_51, %c0_52] : memref<16x128xf32, #tpu.memory_space<vmem>>, vector<16x128xf32>
    tpu.vector_store %arg7[%c0_51, %c0_52], %173 {strides = array<i32>} : memref<16x128xf32, #tpu.memory_space<vmem>>, vector<16x128xf32>,
    return
  }
}

</mosaic_0001>

<llo_original>
// kernel: tpu_custom_call.1
$region0: #{tpu_custom_call.1}
  #allocation0 [shape = 'u32[]', space=smem, size = 0x4, offset = 0x4, fixed_abs, tag = 'smem constant byte address 0x4 - core index']
  #allocation1 [shape = 'u32[72,128]{1,0:T(1,128)}', space=vmem, size = 0x9000, scoped, tag = 'internal scratch']
  %s0 = inlined_call_operand.hbm [shape: f32[16,128], index: 0, kind: input, shape index: {}]
  %s1 = inlined_call_operand.hbm [shape: f32[16,16], index: 1, kind: input, shape index: {}]
  %s2 = inlined_call_operand.hbm [shape: bf16[128,384], index: 2, kind: input, shape index: {}]
  %s3 = inlined_call_operand.hbm [shape: bf16[128,128], index: 3, kind: input, shape index: {}]
  %s4 = inlined_call_operand.hbm [shape: bf16[128,256], index: 4, kind: input, shape index: {}]
  %s5 = inlined_call_operand.hbm [shape: bf16[256,128], index: 5, kind: input, shape index: {}]
  %s6 = inlined_call_operand.hbm [shape: f32[8,384], index: 6, kind: input, shape index: {}]
  %s7 = inlined_call_operand.hbm [shape: f32[16,128], index: 7, kind: output, shape index: {}]
  %s8 = sld [smem:[#allocation0]]
  $region66: #{tpu_custom_call.1} parent=0
    _
  %s10 = ssub.s32 1, %s8
  %s11 = scalar_select 0, %s10, %s8
  $region1: #{tpu_custom_call.1} parent=0
    #allocation2 [shape = 'u8[8192]{0}', space=vmem, size = 0x2000, scoped, tag = 'input window, operand 0, single buffered']
    #allocation3 [shape = 's32[1]{0}', space=sflag, size = 0x4, scoped, tag = 'scoped memory for tpu_custom_call.1']
    #allocation4 [shape = 's32[1]{0}', space=sflag, size = 0x4, scoped, tag = 'scoped memory for tpu_custom_call.1']
    #allocation5 [shape = 'u8[8192]{0}', space=vmem, size = 0x2000, scoped, tag = 'input window, operand 1, single buffered']
    #allocation6 [shape = 's32[1]{0}', space=sflag, size = 0x4, scoped, tag = 'scoped memory for tpu_custom_call.1']
    #allocation7 [shape = 'u8[98304]{0}', space=vmem, size = 0x18000, scoped, tag = 'input window, operand 2, single buffered']
    #allocation8 [shape = 'u8[32768]{0}', space=vmem, size = 0x8000, scoped, tag = 'input window, operand 3, single buffered']
    #allocation9 [shape = 's32[1]{0}', space=sflag, size = 0x4, scoped, tag = 'scoped memory for tpu_custom_call.1']
    #allocation10 [shape = 'u8[65536]{0}', space=vmem, size = 0x10000, scoped, tag = 'input window, operand 4, single buffered']
    #allocation11 [shape = 'u8[65536]{0}', space=vmem, size = 0x10000, scoped, tag = 'input window, operand 5, single buffered']
    #allocation12 [shape = 's32[1]{0}', space=sflag, size = 0x4, scoped, tag = 'scoped memory for tpu_custom_call.1']
    #allocation13 [shape = 'u8[12288]{0}', space=vmem, size = 0x3000, scoped, tag = 'input window, operand 6, single buffered']
    #allocation14 [shape = 'u8[8192]{0}', space=vmem, size = 0x2000, scoped, tag = 'output window, operand 0, single buffered']
    %12 = vsyncpa [#allocation3], 0
    %13 = vsyncpa [#allocation6], 0
    %14 = vsyncpa [#allocation9], 0
    %15 = vsyncpa [#allocation12], 0
    %16 = vsyncpa [#allocation4], 0
    // Predicated region
    $region2: #{tpu_custom_call.1} parent=1 // pred_check
      _
    $region3: #{tpu_custom_call.1} parent=1 // pred_check_branch
      %18 = sbr.rel (0) target = $region5
    $region4: #{tpu_custom_call.1} parent=1 // pred_region
      %20 = vsyncadd [#allocation3], 0
      %s21 = sshll.u32 %s0, 4
      %s22 = int_to_ptr.hbm [resolvable:$true] %s21
      %s23 = sshll.u32 [#allocation2], 4
      %s24 = int_to_ptr.vmem [resolvable:$true] %s23
      %29 = dma.hbm_to_vmem [thread:$0]  %s22, 256, %s24, [#allocation3], 128, 128, 8
    $region5: #{tpu_custom_call.1} parent=1 // pred_fallthru
      _
    // Predicated region
    $region6: #{tpu_custom_call.1} parent=1 // pred_check
      _
    $region7: #{tpu_custom_call.1} parent=1 // pred_check_branch
      %31 = sbr.rel (0) target = $region9
    $region8: #{tpu_custom_call.1} parent=1 // pred_region
      %33 = vsyncadd [#allocation6], 0
      %s34 = sshll.u32 %s1, 4
      %s35 = int_to_ptr.hbm [resolvable:$true] %s34
      %s36 = sshll.u32 [#allocation5], 4
      %s37 = int_to_ptr.vmem [resolvable:$true] %s36
      %42 = dma.hbm_to_vmem [thread:$0]  %s35, 256, %s37, [#allocation6], 128, 128, 8
    $region9: #{tpu_custom_call.1} parent=1 // pred_fallthru
      _
    // Predicated region
    $region10: #{tpu_custom_call.1} parent=1 // pred_check
      _
    $region11: #{tpu_custom_call.1} parent=1 // pred_check_branch
      %44 = sbr.rel (0) target = $region13
    $region12: #{tpu_custom_call.1} parent=1 // pred_region
      %46 = vsyncadd [#allocation6], 0
      %s47 = sshll.u32 %s2, 4
      %s48 = int_to_ptr.hbm [resolvable:$true] %s47
      %s49 = sshll.u32 [#allocation7], 4
      %s50 = int_to_ptr.vmem [resolvable:$true] %s49
      %55 = dma.hbm_to_vmem [thread:$0]  %s48, 3072, %s50, [#allocation6], 192, 192, 12
    $region13: #{tpu_custom_call.1} parent=1 // pred_fallthru
      _
    // Predicated region
    $region14: #{tpu_custom_call.1} parent=1 // pred_check
      _
    $region15: #{tpu_custom_call.1} parent=1 // pred_check_branch
      %57 = sbr.rel (0) target = $region17
    $region16: #{tpu_custom_call.1} parent=1 // pred_region
      %59 = vsyncadd [#allocation9], 0
      %s60 = sshll.u32 %s3, 4
      %s61 = int_to_ptr.hbm [resolvable:$true] %s60
      %s62 = sshll.u32 [#allocation8], 4
      %s63 = int_to_ptr.vmem [resolvable:$true] %s62
      %68 = dma.hbm_to_vmem [thread:$0]  %s61, 1024, %s63, [#allocation9], 64, 64, 4
    $region17: #{tpu_custom_call.1} parent=1 // pred_fallthru
      _
    // Predicated region
    $region18: #{tpu_custom_call.1} parent=1 // pred_check
      _
    $region19: #{tpu_custom_call.1} parent=1 // pred_check_branch
      %70 = sbr.rel (0) target = $region21
    $region20: #{tpu_custom_call.1} parent=1 // pred_region
      %72 = vsyncadd [#allocation9], 0
      %s73 = sshll.u32 %s4, 4
      %s74 = int_to_ptr.hbm [resolvable:$true] %s73
      %s75 = sshll.u32 [#allocation10], 4
      %s76 = int_to_ptr.vmem [resolvable:$true] %s75
      %81 = dma.hbm_to_vmem [thread:$0]  %s74, 2048, %s76, [#allocation9], 128, 128, 8
    $region21: #{tpu_custom_call.1} parent=1 // pred_fallthru
      _
    // Predicated region
    $region22: #{tpu_custom_call.1} parent=1 // pred_check
      _
    $region23: #{tpu_custom_call.1} parent=1 // pred_check_branch
      %83 = sbr.rel (0) target = $region25
    $region24: #{tpu_custom_call.1} parent=1 // pred_region
      %85 = vsyncadd [#allocation12], 0
      %s86 = sshll.u32 %s5, 4
      %s87 = int_to_ptr.hbm [resolvable:$true] %s86
      %s88 = sshll.u32 [#allocation11], 4
      %s89 = int_to_ptr.vmem [resolvable:$true] %s88
      %94 = dma.hbm_to_vmem [thread:$0]  %s87, 2048, %s89, [#allocation12], 64, 64, 4
    $region25: #{tpu_custom_call.1} parent=1 // pred_fallthru
      _
    // Predicated region
    $region26: #{tpu_custom_call.1} parent=1 // pred_check
      _
    $region27: #{tpu_custom_call.1} parent=1 // pred_check_branch
      %96 = sbr.rel (0) target = $region29
    $region28: #{tpu_custom_call.1} parent=1 // pred_region
      %98 = vsyncadd [#allocation12], 0
      %s100 = sshll.u32 %s6, 4
      %s101 = int_to_ptr.hbm [resolvable:$true] %s100
      %s102 = sshll.u32 [#allocation13], 4
      %s103 = int_to_ptr.vmem [resolvable:$true] %s102
      %105 = dma.hbm_to_vmem [thread:$0]  %s101, 384, %s103, [#allocation12]
    $region29: #{tpu_custom_call.1} parent=1 // pred_fallthru
      _
    // Predicated region
    $region30: #{tpu_custom_call.1} parent=1 // pred_check
      _
    $region31: #{tpu_custom_call.1} parent=1 // pred_check_branch
      %107 = sbr.rel (0) target = $region33
    $region32: #{tpu_custom_call.1} parent=1 // pred_region
      %109 = dma.done [#allocation3], 256
    $region33: #{tpu_custom_call.1} parent=1 // pred_fallthru
      _
    // Predicated region
    $region34: #{tpu_custom_call.1} parent=1 // pred_check
      _
    $region35: #{tpu_custom_call.1} parent=1 // pred_check_branch
      %111 = sbr.rel (0) target = $region37
    $region36: #{tpu_custom_call.1} parent=1 // pred_region
      %113 = dma.done [#allocation6], 256
    $region37: #{tpu_custom_call.1} parent=1 // pred_fallthru
      _
    // Predicated region
    $region38: #{tpu_custom_call.1} parent=1 // pred_check
      _
    $region39: #{tpu_custom_call.1} parent=1 // pred_check_branch
      %115 = sbr.rel (0) target = $region41
    $region40: #{tpu_custom_call.1} parent=1 // pred_region
      %117 = dma.done [#allocation6], 3072
    $region41: #{tpu_custom_call.1} parent=1 // pred_fallthru
      _
    // Predicated region
    $region42: #{tpu_custom_call.1} parent=1 // pred_check
      _
    $region43: #{tpu_custom_call.1} parent=1 // pred_check_branch
      %119 = sbr.rel (0) target = $region45
    $region44: #{tpu_custom_call.1} parent=1 // pred_region
      %121 = dma.done [#allocation9], 1024
    $region45: #{tpu_custom_call.1} parent=1 // pred_fallthru
      _
    // Predicated region
    $region46: #{tpu_custom_call.1} parent=1 // pred_check
      _
    $region47: #{tpu_custom_call.1} parent=1 // pred_check_branch
      %123 = sbr.rel (0) target = $region49
    $region48: #{tpu_custom_call.1} parent=1 // pred_region
      %125 = dma.done [#allocation9], 2048
    $region49: #{tpu_custom_call.1} parent=1 // pred_fallthru
      _
    // Predicated region
    $region50: #{tpu_custom_call.1} parent=1 // pred_check
      _
    $region51: #{tpu_custom_call.1} parent=1 // pred_check_branch
      %127 = sbr.rel (0) target = $region53
    $region52: #{tpu_custom_call.1} parent=1 // pred_region
      %129 = dma.done [#allocation12], 2048
    $region53: #{tpu_custom_call.1} parent=1 // pred_fallthru
      _
    // Predicated region
    $region54: #{tpu_custom_call.1} parent=1 // pred_check
      _
    $region55: #{tpu_custom_call.1} parent=1 // pred_check_branch
      %131 = sbr.rel (0) target = $region57
    $region56: #{tpu_custom_call.1} parent=1 // pred_region
      %133 = dma.done [#allocation12], 384
    $region57: #{tpu_custom_call.1} parent=1 // pred_fallthru
      _
    %v135 = vld [vmem:[#allocation2] sm:$0xff]
    %v136 = vld [vmem:[#allocation2 + $0x8] sm:$0xff]
    %v137 = vpack.c.bf16 %v136, %v135
    %v138 = vld [vmem:[#allocation13] sm:$0xff]
    %v139 = vld [vmem:[#allocation13 + $0x8] sm:$0xff]
    %v140 = vld [vmem:[#allocation13 + $0x10] sm:$0xff]
    %v141 = vld [vmem:[#allocation7] sm:$0xff]
    %v142 = vld [vmem:[#allocation7 + $0x8] sm:$0xf]
    %v143 = vld [vmem:[#allocation7 + $0xc] sm:$0xff]
    %v144 = vld [vmem:[#allocation7 + $0x14] sm:$0xf]
    %v145 = vld [vmem:[#allocation7 + $0x18] sm:$0xff]
    %v146 = vld [vmem:[#allocation7 + $0x20] sm:$0xf]
    %v147 = vld [vmem:[#allocation7 + $0x24] sm:$0xff]
    %v148 = vld [vmem:[#allocation7 + $0x2c] sm:$0xf]
    %v149 = vld [vmem:[#allocation7 + $0x30] sm:$0xff]
    %v150 = vld [vmem:[#allocation7 + $0x38] sm:$0xf]
    %v151 = vld [vmem:[#allocation7 + $0x3c] sm:$0xff]
    %v152 = vld [vmem:[#allocation7 + $0x44] sm:$0xf]
    %v153 = vld [vmem:[#allocation7 + $0x48] sm:$0xff]
    %v154 = vld [vmem:[#allocation7 + $0x50] sm:$0xf]
    %v155 = vld [vmem:[#allocation7 + $0x54] sm:$0xff]
    %v156 = vld [vmem:[#allocation7 + $0x5c] sm:$0xf]
    %v157 = vld [vmem:[#allocation7 + $0x60] sm:$0xff]
    %v158 = vld [vmem:[#allocation7 + $0x68] sm:$0xf]
    %v159 = vld [vmem:[#allocation7 + $0x6c] sm:$0xff]
    %v160 = vld [vmem:[#allocation7 + $0x74] sm:$0xf]
    %v161 = vld [vmem:[#allocation7 + $0x78] sm:$0xff]
    %v162 = vld [vmem:[#allocation7 + $0x80] sm:$0xf]
    %v163 = vld [vmem:[#allocation7 + $0x84] sm:$0xff]
    %v164 = vld [vmem:[#allocation7 + $0x8c] sm:$0xf]
    %v165 = vld [vmem:[#allocation7 + $0x90] sm:$0xff]
    %v166 = vld [vmem:[#allocation7 + $0x98] sm:$0xf]
    %v167 = vld [vmem:[#allocation7 + $0x9c] sm:$0xff]
    %v168 = vld [vmem:[#allocation7 + $0xa4] sm:$0xf]
    %v169 = vld [vmem:[#allocation7 + $0xa8] sm:$0xff]
    %v170 = vld [vmem:[#allocation7 + $0xb0] sm:$0xf]
    %v171 = vld [vmem:[#allocation7 + $0xb4] sm:$0xff]
    %v172 = vld [vmem:[#allocation7 + $0xbc] sm:$0xf]
    %v173 = vperm.slane %v138, 0
    %v174 = vperm.slane %v139, 0
    %v175 = vperm.slane %v140, 0
    %v208 = vunpack.c.l.b16 %v141
    %v209 = vunpack.c.h.b16 %v141
    %v210 = vunpack.c.l.b16 %v142
    %v211 = vunpack.c.l.b16 %v143
    %v212 = vunpack.c.h.b16 %v143
    %v213 = vunpack.c.l.b16 %v144
    %v214 = vunpack.c.l.b16 %v145
    %v215 = vunpack.c.h.b16 %v145
    %v216 = vunpack.c.l.b16 %v146
    %v217 = vunpack.c.l.b16 %v147
    %v218 = vunpack.c.h.b16 %v147
    %v219 = vunpack.c.l.b16 %v148
    %v220 = vunpack.c.l.b16 %v149
    %v221 = vunpack.c.h.b16 %v149
    %v222 = vunpack.c.l.b16 %v150
    %v223 = vunpack.c.l.b16 %v151
    %v224 = vunpack.c.h.b16 %v151
    %v225 = vunpack.c.l.b16 %v152
    %v226 = vunpack.c.l.b16 %v153
    %v227 = vunpack.c.h.b16 %v153
    %v228 = vunpack.c.l.b16 %v154
    %v229 = vunpack.c.l.b16 %v155
    %v230 = vunpack.c.h.b16 %v155
    %v231 = vunpack.c.l.b16 %v156
    %v232 = vunpack.c.l.b16 %v157
    %v233 = vunpack.c.h.b16 %v157
    %v234 = vunpack.c.l.b16 %v158
    %v235 = vunpack.c.l.b16 %v159
    %v236 = vunpack.c.h.b16 %v159
    %v237 = vunpack.c.l.b16 %v160
    %v238 = vunpack.c.l.b16 %v161
    %v239 = vunpack.c.h.b16 %v161
    %v240 = vunpack.c.l.b16 %v162
    %v241 = vunpack.c.l.b16 %v163
    %v242 = vunpack.c.h.b16 %v163
    %v243 = vunpack.c.l.b16 %v164
    %v244 = vunpack.c.l.b16 %v165
    %v245 = vunpack.c.h.b16 %v165
    %v246 = vunpack.c.l.b16 %v166
    %v247 = vunpack.c.l.b16 %v167
    %v248 = vunpack.c.h.b16 %v167
    %v249 = vunpack.c.l.b16 %v168
    %v250 = vunpack.c.l.b16 %v169
    %v251 = vunpack.c.h.b16 %v169
    %v252 = vunpack.c.l.b16 %v170
    %v253 = vunpack.c.l.b16 %v171
    %v254 = vunpack.c.h.b16 %v171
    %v255 = vunpack.c.l.b16 %v172
    %v256 = vpack.c.b16 %v211, %v208
    %v257 = vpack.c.b16 %v212, %v209
    %v258 = vpack.c.b16 %v213, %v210
    %v259 = vpack.c.b16 %v217, %v214
    %v260 = vpack.c.b16 %v218, %v215
    %v261 = vpack.c.b16 %v219, %v216
    %v262 = vpack.c.b16 %v223, %v220
    %v263 = vpack.c.b16 %v224, %v221
    %v264 = vpack.c.b16 %v225, %v222
    %v265 = vpack.c.b16 %v229, %v226
    %v266 = vpack.c.b16 %v230, %v227
    %v267 = vpack.c.b16 %v231, %v228
    %v268 = vpack.c.b16 %v235, %v232
    %v269 = vpack.c.b16 %v236, %v233
    %v270 = vpack.c.b16 %v237, %v234
    %v271 = vpack.c.b16 %v241, %v238
    %v272 = vpack.c.b16 %v242, %v239
    %v273 = vpack.c.b16 %v243, %v240
    %v274 = vpack.c.b16 %v247, %v244
    %v275 = vpack.c.b16 %v248, %v245
    %v276 = vpack.c.b16 %v249, %v246
    %v277 = vpack.c.b16 %v253, %v250
    %v278 = vpack.c.b16 %v254, %v251
    %v279 = vpack.c.b16 %v255, %v252
    %304 = vmatpush.bf16.msra.mxu0 %v277
    %305 = vmatpush.bf16.msra.mxu0 %v274
    %306 = vmatpush.bf16.msra.mxu0 %v271
    %307 = vmatpush.bf16.msra.mxu0 %v268
    %308 = vmatpush.bf16.msra.mxu0 %v265
    %309 = vmatpush.bf16.msra.mxu0 %v262
    %310 = vmatpush.bf16.msra.mxu0 %v259
    %311 = vmatpush.bf16.msra.mxu0 %v256
    %312 = vmatmul.bf16.gmra.mxu0 %v137
    %v313 = vpop.f32.mrf.mxu0
    %v314 = vadd.f32 %v173, %v313
    %v315 = vpop.f32.mrf.mxu0
    %v316 = vadd.f32 %v173, %v315
    %317 = vdwg.mxu0
    %318 = vmatpush.bf16.msra.mxu0 %v278
    %319 = vmatpush.bf16.msra.mxu0 %v275
    %320 = vmatpush.bf16.msra.mxu0 %v272
    %321 = vmatpush.bf16.msra.mxu0 %v269
    %322 = vmatpush.bf16.msra.mxu0 %v266
    %323 = vmatpush.bf16.msra.mxu0 %v263
    %324 = vmatpush.bf16.msra.mxu0 %v260
    %325 = vmatpush.bf16.msra.mxu0 %v257
    %326 = vmatmul.bf16.gmra.mxu0 %v137
    %v327 = vpop.f32.mrf.mxu0
    %v328 = vadd.f32 %v174, %v327
    %v329 = vpop.f32.mrf.mxu0
    %v330 = vadd.f32 %v174, %v329
    %331 = vdwg.mxu0
    %332 = vmatpush.bf16.msra.mxu0 %v279
    %333 = vmatpush.bf16.msra.mxu0 %v276
    %334 = vmatpush.bf16.msra.mxu0 %v273
    %335 = vmatpush.bf16.msra.mxu0 %v270
    %336 = vmatpush.bf16.msra.mxu0 %v267
    %337 = vmatpush.bf16.msra.mxu0 %v264
    %338 = vmatpush.bf16.msra.mxu0 %v261
    %339 = vmatpush.bf16.msra.mxu0 %v258
    %340 = vmatmul.bf16.gmra.mxu0 %v137
    %v341 = vpop.f32.mrf.mxu0
    %v342 = vadd.f32 %v175, %v341
    %v343 = vpop.f32.mrf.mxu0
    %v344 = vadd.f32 %v175, %v343
    %345 = vdwg.mxu0
    %v346 = vpack.c.bf16 %v328, %v314
    %v347 = vpack.c.bf16 %v342, %v342
    %v348 = vpack.c.bf16 %v330, %v316
    %v349 = vpack.c.bf16 %v344, %v344
    %v350 = vld [vmem:[#allocation5] sm:$0xff]
    %v351 = vld [vmem:[#allocation5 + $0x8] sm:$0xff]
    %v352 = vld [vmem:[#allocation8] sm:$0xf]
    %v353 = vld [vmem:[#allocation8 + $0x4] sm:$0xf]
    %v354 = vld [vmem:[#allocation8 + $0x8] sm:$0xf]
    %v355 = vld [vmem:[#allocation8 + $0xc] sm:$0xf]
    %v356 = vld [vmem:[#allocation8 + $0x10] sm:$0xf]
    %v357 = vld [vmem:[#allocation8 + $0x14] sm:$0xf]
    %v358 = vld [vmem:[#allocation8 + $0x18] sm:$0xf]
    %v359 = vld [vmem:[#allocation8 + $0x1c] sm:$0xf]
    %v360 = vld [vmem:[#allocation8 + $0x20] sm:$0xf]
    %v361 = vld [vmem:[#allocation8 + $0x24] sm:$0xf]
    %v362 = vld [vmem:[#allocation8 + $0x28] sm:$0xf]
    %v363 = vld [vmem:[#allocation8 + $0x2c] sm:$0xf]
    %v364 = vld [vmem:[#allocation8 + $0x30] sm:$0xf]
    %v365 = vld [vmem:[#allocation8 + $0x34] sm:$0xf]
    %v366 = vld [vmem:[#allocation8 + $0x38] sm:$0xf]
    %v367 = vld [vmem:[#allocation8 + $0x3c] sm:$0xf]
    %v370 = vunpack.c.l.b16 %v346
    %v371 = vunpack.c.l.b16 %v348
    %v372 = vpack.c.b16 %v371, %v370
    %v373 = vunpack.c.h.b16 %v346
    %v374 = vunpack.c.h.b16 %v348
    %v375 = vpack.c.b16 %v374, %v373
    %vm376 = vcmask 261120
    %v378 = vsel %vm376, %v372, 0
    %v381 = vsel %vm376, %v375, 0
    %383 = vmatpush.bf16.xpose.msra.mxu0 0
    %384 = vmatpush.bf16.xpose.msra.mxu0 0
    %385 = vmatpush.bf16.xpose.msra.mxu0 0
    %386 = vmatpush.bf16.xpose.msra.mxu0 0
    %387 = vmatpush.bf16.xpose.msra.mxu0 0
    %388 = vmatpush.bf16.xpose.msra.mxu0 0
    %389 = vmatpush.bf16.xpose.msra.mxu0 0
    %390 = vmatpush.bf16.xpose.msra.mxu0 %v381
    %391 = vmatmul.bf16.gmra.mxu0 %v378
    %v392 = vpop.f32.mrf.mxu0
    %v393 = vadd.f32 0.0, %v392
    %v394 = vpop.f32.mrf.mxu0
    %v395 = vadd.f32 0.0, %v394
    %396 = vdwg.mxu0
    %v397 = vmul.f32 %v393, 0.17677669
    %v398 = vmul.f32 %v395, 0.17677669
    %v399 = vadd.f32 %v397, %v350
    %v400 = vadd.f32 %v398, %v351
    %vm401 = vcmask 130048
    %v402 = vsel %vm401, %v399, -inf
    %403 = vmax.xlane.f32.xlu0 %v402
    %v404 = vpop.xlane.xlu0 %403
    %v405 = vsel %vm401, %v400, -inf
    %406 = vmax.xlane.f32.xlu0 %v405
    %v407 = vpop.xlane.xlu0 %406
    %v408 = vsub.f32 %v399, %v404
    %v409 = vsub.f32 %v400, %v407
    %v410 = vmul.f32 %v408, 1.442695
    %v411 = vpow.pop %v410
    %v412 = vmul.f32 %v409, 1.442695
    %v413 = vpow.pop %v412
    %v414 = vsel %vm401, %v411, 0.0
    %415 = vadd.xlane.f32.xlu0 %v414
    %v416 = vpop.xlane.xlu0 %415
    %v417 = vsel %vm401, %v413, 0.0
    %418 = vadd.xlane.f32.xlu0 %v417
    %v419 = vpop.xlane.xlu0 %418
    %v420 = vrcp.pop %v416
    %v421 = vmul.f32 %v416, %v420
    %v422 = vsub.f32 1.0, %v421
    %v423 = vmul.f32 %v420, %v422
    %v424 = vadd.f32 %v420, %v423
    %vm425 = vweird.f32 %v416
    %vm426 = vweird.f32 %v420
    %vm427 = vmor %vm425, %vm426
    %v428 = vsel %vm427, %v420, %v424
    %v429 = vand.u32 2147483647, %v416
    %vm430 = vcmp.eq.f32.partialorder %v429, 8.507059e+37
    %v431 = vand.u32 %v416, 2147483648
    %v432 = vor.u32 1.1754944e-38, %v431
    %v433 = vsel %vm430, %v432, %v428
    %v434 = vrcp.pop %v419
    %v435 = vmul.f32 %v419, %v434
    %v436 = vsub.f32 1.0, %v435
    %v437 = vmul.f32 %v434, %v436
    %v438 = vadd.f32 %v434, %v437
    %vm439 = vweird.f32 %v419
    %vm440 = vweird.f32 %v434
    %vm441 = vmor %vm439, %vm440
    %v442 = vsel %vm441, %v434, %v438
    %v443 = vand.u32 2147483647, %v419
    %vm444 = vcmp.eq.f32.partialorder %v443, 8.507059e+37
    %v445 = vand.u32 %v419, 2147483648
    %v446 = vor.u32 1.1754944e-38, %v445
    %v447 = vsel %vm444, %v446, %v442
    %v448 = vmul.f32 %v411, %v433
    %v449 = vmul.f32 %v413, %v447
    %v450 = vpack.c.bf16 %v449, %v448
    %v453 = vunpack.c.l.b16 %v347
    %v454 = vunpack.c.l.b16 %v349
    %v455 = vpack.c.b16 %v454, %v453
    %v458 = vsel %vm401, %v450, 0
    %460 = vmatpush.bf16.msra.mxu0 0
    %461 = vmatpush.bf16.msra.mxu0 0
    %462 = vmatpush.bf16.msra.mxu0 0
    %463 = vmatpush.bf16.msra.mxu0 0
    %464 = vmatpush.bf16.msra.mxu0 0
    %465 = vmatpush.bf16.msra.mxu0 0
    %466 = vmatpush.bf16.msra.mxu0 0
    %467 = vmatpush.bf16.msra.mxu0 %v455
    %468 = vmatmul.bf16.gmra.mxu0 %v458
    %v469 = vpop.f32.mrf.mxu0
    %v470 = vadd.f32 0.0, %v469
    %v471 = vpop.f32.mrf.mxu0
    %v472 = vadd.f32 0.0, %v471
    %473 = vdwg.mxu0
    %v474 = vpack.c.bf16 %v472, %v470
    %475 = vrot.lane.b32.xlu0 %v372, 96
    %v476 = vpop.permute.xlu0 %475
    %477 = vrot.lane.b32.xlu0 %v375, 96
    %v478 = vpop.permute.xlu0 %477
    %v480 = vsel %vm376, %v476, 0
    %v483 = vsel %vm376, %v478, 0
    %485 = vmatpush.bf16.xpose.msra.mxu0 0
    %486 = vmatpush.bf16.xpose.msra.mxu0 0
    %487 = vmatpush.bf16.xpose.msra.mxu0 0
    %488 = vmatpush.bf16.xpose.msra.mxu0 0
    %489 = vmatpush.bf16.xpose.msra.mxu0 0
    %490 = vmatpush.bf16.xpose.msra.mxu0 0
    %491 = vmatpush.bf16.xpose.msra.mxu0 0
    %492 = vmatpush.bf16.xpose.msra.mxu0 %v483
    %493 = vmatmul.bf16.gmra.mxu0 %v480
    %v494 = vpop.f32.mrf.mxu0
    %v495 = vadd.f32 0.0, %v494
    %v496 = vpop.f32.mrf.mxu0
    %v497 = vadd.f32 0.0, %v496
    %498 = vdwg.mxu0
    %v499 = vmul.f32 %v495, 0.17677669
    %v500 = vmul.f32 %v497, 0.17677669
    %v501 = vadd.f32 %v499, %v350
    %v502 = vadd.f32 %v500, %v351
    %v503 = vsel %vm401, %v501, -inf
    %504 = vmax.xlane.f32.xlu0 %v503
    %v505 = vpop.xlane.xlu0 %504
    %v506 = vsel %vm401, %v502, -inf
    %507 = vmax.xlane.f32.xlu0 %v506
    %v508 = vpop.xlane.xlu0 %507
    %v509 = vsub.f32 %v501, %v505
    %v510 = vsub.f32 %v502, %v508
    %v511 = vmul.f32 %v509, 1.442695
    %v512 = vpow.pop %v511
    %v513 = vmul.f32 %v510, 1.442695
    %v514 = vpow.pop %v513
    %v515 = vsel %vm401, %v512, 0.0
    %516 = vadd.xlane.f32.xlu0 %v515
    %v517 = vpop.xlane.xlu0 %516
    %v518 = vsel %vm401, %v514, 0.0
    %519 = vadd.xlane.f32.xlu0 %v518
    %v520 = vpop.xlane.xlu0 %519
    %v521 = vrcp.pop %v517
    %v522 = vmul.f32 %v517, %v521
    %v523 = vsub.f32 1.0, %v522
    %v524 = vmul.f32 %v521, %v523
    %v525 = vadd.f32 %v521, %v524
    %vm526 = vweird.f32 %v517
    %vm527 = vweird.f32 %v521
    %vm528 = vmor %vm526, %vm527
    %v529 = vsel %vm528, %v521, %v525
    %v530 = vand.u32 2147483647, %v517
    %vm531 = vcmp.eq.f32.partialorder %v530, 8.507059e+37
    %v532 = vand.u32 %v517, 2147483648
    %v533 = vor.u32 1.1754944e-38, %v532
    %v534 = vsel %vm531, %v533, %v529
    %v535 = vrcp.pop %v520
    %v536 = vmul.f32 %v520, %v535
    %v537 = vsub.f32 1.0, %v536
    %v538 = vmul.f32 %v535, %v537
    %v539 = vadd.f32 %v535, %v538
    %vm540 = vweird.f32 %v520
    %vm541 = vweird.f32 %v535
    %vm542 = vmor %vm540, %vm541
    %v543 = vsel %vm542, %v535, %v539
    %v544 = vand.u32 2147483647, %v520
    %vm545 = vcmp.eq.f32.partialorder %v544, 8.507059e+37
    %v546 = vand.u32 %v520, 2147483648
    %v547 = vor.u32 1.1754944e-38, %v546
    %v548 = vsel %vm545, %v547, %v543
    %v549 = vmul.f32 %v512, %v534
    %v550 = vmul.f32 %v514, %v548
    %v551 = vpack.c.bf16 %v550, %v549
    %552 = vrot.lane.b32.xlu0 %v455, 96
    %v553 = vpop.permute.xlu0 %552
    %v556 = vsel %vm401, %v551, 0
    %558 = vmatpush.bf16.msra.mxu0 0
    %559 = vmatpush.bf16.msra.mxu0 0
    %560 = vmatpush.bf16.msra.mxu0 0
    %561 = vmatpush.bf16.msra.mxu0 0
    %562 = vmatpush.bf16.msra.mxu0 0
    %563 = vmatpush.bf16.msra.mxu0 0
    %564 = vmatpush.bf16.msra.mxu0 0
    %565 = vmatpush.bf16.msra.mxu0 %v553
    %566 = vmatmul.bf16.gmra.mxu0 %v556
    %v567 = vpop.f32.mrf.mxu0
    %v568 = vadd.f32 0.0, %v567
    %v569 = vpop.f32.mrf.mxu0
    %v570 = vadd.f32 0.0, %v569
    %571 = vdwg.mxu0
    %v572 = vpack.c.bf16 %v570, %v568
    %v577 = vunpack.c.l.b16 %v356
    %v578 = vunpack.c.l.b16 %v357
    %v579 = vunpack.c.l.b16 %v358
    %v580 = vunpack.c.l.b16 %v359
    %v581 = vpack.c.b16 %v578, %v577
    %v582 = vpack.c.b16 %v580, %v579
    %v586 = vsel %vm376, %v572, 0
    %588 = vmatpush.bf16.msra.mxu0 0
    %589 = vmatpush.bf16.msra.mxu0 0
    %590 = vmatpush.bf16.msra.mxu0 0
    %591 = vmatpush.bf16.msra.mxu0 0
    %592 = vmatpush.bf16.msra.mxu0 0
    %593 = vmatpush.bf16.msra.mxu0 0
    %594 = vmatpush.bf16.msra.mxu0 %v582
    %595 = vmatpush.bf16.msra.mxu0 %v581
    %596 = vmatmul.bf16.gmra.mxu0 %v586
    %v597 = vpop.f32.mrf.mxu0
    %v598 = vadd.f32 0.0, %v597
    %v599 = vpop.f32.mrf.mxu0
    %v600 = vadd.f32 0.0, %v599
    %601 = vdwg.mxu0
    %v606 = vunpack.c.l.b16 %v352
    %v607 = vunpack.c.l.b16 %v353
    %v608 = vunpack.c.l.b16 %v354
    %v609 = vunpack.c.l.b16 %v355
    %v610 = vpack.c.b16 %v607, %v606
    %v611 = vpack.c.b16 %v609, %v608
    %v615 = vsel %vm376, %v474, 0
    %617 = vmatpush.bf16.msra.mxu0 0
    %618 = vmatpush.bf16.msra.mxu0 0
    %619 = vmatpush.bf16.msra.mxu0 0
    %620 = vmatpush.bf16.msra.mxu0 0
    %621 = vmatpush.bf16.msra.mxu0 0
    %622 = vmatpush.bf16.msra.mxu0 0
    %623 = vmatpush.bf16.msra.mxu0 %v611
    %624 = vmatpush.bf16.msra.mxu0 %v610
    %625 = vmatmul.bf16.gmra.mxu0 %v615
    %v626 = vpop.f32.mrf.mxu0
    %v627 = vadd.f32 %v598, %v626
    %v628 = vpop.f32.mrf.mxu0
    %v629 = vadd.f32 %v600, %v628
    %630 = vdwg.mxu0
    %631 = vrot.lane.b32.xlu0 %v372, 64
    %v632 = vpop.permute.xlu0 %631
    %633 = vrot.lane.b32.xlu0 %v375, 64
    %v634 = vpop.permute.xlu0 %633
    %v636 = vsel %vm376, %v632, 0
    %v639 = vsel %vm376, %v634, 0
    %641 = vmatpush.bf16.xpose.msra.mxu0 0
    %642 = vmatpush.bf16.xpose.msra.mxu0 0
    %643 = vmatpush.bf16.xpose.msra.mxu0 0
    %644 = vmatpush.bf16.xpose.msra.mxu0 0
    %645 = vmatpush.bf16.xpose.msra.mxu0 0
    %646 = vmatpush.bf16.xpose.msra.mxu0 0
    %647 = vmatpush.bf16.xpose.msra.mxu0 0
    %648 = vmatpush.bf16.xpose.msra.mxu0 %v639
    %649 = vmatmul.bf16.gmra.mxu0 %v636
    %v650 = vpop.f32.mrf.mxu0
    %v651 = vadd.f32 0.0, %v650
    %v652 = vpop.f32.mrf.mxu0
    %v653 = vadd.f32 0.0, %v652
    %654 = vdwg.mxu0
    %v655 = vmul.f32 %v651, 0.17677669
    %v656 = vmul.f32 %v653, 0.17677669
    %v657 = vadd.f32 %v655, %v350
    %v658 = vadd.f32 %v656, %v351
    %v659 = vsel %vm401, %v657, -inf
    %660 = vmax.xlane.f32.xlu0 %v659
    %v661 = vpop.xlane.xlu0 %660
    %v662 = vsel %vm401, %v658, -inf
    %663 = vmax.xlane.f32.xlu0 %v662
    %v664 = vpop.xlane.xlu0 %663
    %v665 = vsub.f32 %v657, %v661
    %v666 = vsub.f32 %v658, %v664
    %v667 = vmul.f32 %v665, 1.442695
    %v668 = vpow.pop %v667
    %v669 = vmul.f32 %v666, 1.442695
    %v670 = vpow.pop %v669
    %v671 = vsel %vm401, %v668, 0.0
    %672 = vadd.xlane.f32.xlu0 %v671
    %v673 = vpop.xlane.xlu0 %672
    %v674 = vsel %vm401, %v670, 0.0
    %675 = vadd.xlane.f32.xlu0 %v674
    %v676 = vpop.xlane.xlu0 %675
    %v677 = vrcp.pop %v673
    %v678 = vmul.f32 %v673, %v677
    %v679 = vsub.f32 1.0, %v678
    %v680 = vmul.f32 %v677, %v679
    %v681 = vadd.f32 %v677, %v680
    %vm682 = vweird.f32 %v673
    %vm683 = vweird.f32 %v677
    %vm684 = vmor %vm682, %vm683
    %v685 = vsel %vm684, %v677, %v681
    %v686 = vand.u32 2147483647, %v673
    %vm687 = vcmp.eq.f32.partialorder %v686, 8.507059e+37
    %v688 = vand.u32 %v673, 2147483648
    %v689 = vor.u32 1.1754944e-38, %v688
    %v690 = vsel %vm687, %v689, %v685
    %v691 = vrcp.pop %v676
    %v692 = vmul.f32 %v676, %v691
    %v693 = vsub.f32 1.0, %v692
    %v694 = vmul.f32 %v691, %v693
    %v695 = vadd.f32 %v691, %v694
    %vm696 = vweird.f32 %v676
    %vm697 = vweird.f32 %v691
    %vm698 = vmor %vm696, %vm697
    %v699 = vsel %vm698, %v691, %v695
    %v700 = vand.u32 2147483647, %v676
    %vm701 = vcmp.eq.f32.partialorder %v700, 8.507059e+37
    %v702 = vand.u32 %v676, 2147483648
    %v703 = vor.u32 1.1754944e-38, %v702
    %v704 = vsel %vm701, %v703, %v699
    %v705 = vmul.f32 %v668, %v690
    %v706 = vmul.f32 %v670, %v704
    %v707 = vpack.c.bf16 %v706, %v705
    %708 = vrot.lane.b32.xlu0 %v455, 64
    %v709 = vpop.permute.xlu0 %708
    %v712 = vsel %vm401, %v707, 0
    %714 = vmatpush.bf16.msra.mxu0 0
    %715 = vmatpush.bf16.msra.mxu0 0
    %716 = vmatpush.bf16.msra.mxu0 0
    %717 = vmatpush.bf16.msra.mxu0 0
    %718 = vmatpush.bf16.msra.mxu0 0
    %719 = vmatpush.bf16.msra.mxu0 0
    %720 = vmatpush.bf16.msra.mxu0 0
    %721 = vmatpush.bf16.msra.mxu0 %v709
    %722 = vmatmul.bf16.gmra.mxu0 %v712
    %v723 = vpop.f32.mrf.mxu0
    %v724 = vadd.f32 0.0, %v723
    %v725 = vpop.f32.mrf.mxu0
    %v726 = vadd.f32 0.0, %v725
    %727 = vdwg.mxu0
    %v728 = vpack.c.bf16 %v726, %v724
    %v733 = vunpack.c.l.b16 %v360
    %v734 = vunpack.c.l.b16 %v361
    %v735 = vunpack.c.l.b16 %v362
    %v736 = vunpack.c.l.b16 %v363
    %v737 = vpack.c.b16 %v734, %v733
    %v738 = vpack.c.b16 %v736, %v735
    %v742 = vsel %vm376, %v728, 0
    %744 = vmatpush.bf16.msra.mxu0 0
    %745 = vmatpush.bf16.msra.mxu0 0
    %746 = vmatpush.bf16.msra.mxu0 0
    %747 = vmatpush.bf16.msra.mxu0 0
    %748 = vmatpush.bf16.msra.mxu0 0
    %749 = vmatpush.bf16.msra.mxu0 0
    %750 = vmatpush.bf16.msra.mxu0 %v738
    %751 = vmatpush.bf16.msra.mxu0 %v737
    %752 = vmatmul.bf16.gmra.mxu0 %v742
    %v753 = vpop.f32.mrf.mxu0
    %v754 = vadd.f32 0.0, %v753
    %v755 = vpop.f32.mrf.mxu0
    %v756 = vadd.f32 0.0, %v755
    %757 = vdwg.mxu0
    %v758 = vadd.f32 %v627, %v754
    %v759 = vadd.f32 %v629, %v756
    %760 = vrot.lane.b32.xlu0 %v372, 32
    %v761 = vpop.permute.xlu0 %760
    %762 = vrot.lane.b32.xlu0 %v375, 32
    %v763 = vpop.permute.xlu0 %762
    %v765 = vsel %vm376, %v761, 0
    %v768 = vsel %vm376, %v763, 0
    %770 = vmatpush.bf16.xpose.msra.mxu0 0
    %771 = vmatpush.bf16.xpose.msra.mxu0 0
    %772 = vmatpush.bf16.xpose.msra.mxu0 0
    %773 = vmatpush.bf16.xpose.msra.mxu0 0
    %774 = vmatpush.bf16.xpose.msra.mxu0 0
    %775 = vmatpush.bf16.xpose.msra.mxu0 0
    %776 = vmatpush.bf16.xpose.msra.mxu0 0
    %777 = vmatpush.bf16.xpose.msra.mxu0 %v768
    %778 = vmatmul.bf16.gmra.mxu0 %v765
    %v779 = vpop.f32.mrf.mxu0
    %v780 = vadd.f32 0.0, %v779
    %v781 = vpop.f32.mrf.mxu0
    %v782 = vadd.f32 0.0, %v781
    %783 = vdwg.mxu0
    %v784 = vmul.f32 %v780, 0.17677669
    %v785 = vmul.f32 %v782, 0.17677669
    %v786 = vadd.f32 %v784, %v350
    %v787 = vadd.f32 %v785, %v351
    %v788 = vsel %vm401, %v786, -inf
    %789 = vmax.xlane.f32.xlu0 %v788
    %v790 = vpop.xlane.xlu0 %789
    %v791 = vsel %vm401, %v787, -inf
    %792 = vmax.xlane.f32.xlu0 %v791
    %v793 = vpop.xlane.xlu0 %792
    %v794 = vsub.f32 %v786, %v790
    %v795 = vsub.f32 %v787, %v793
    %v796 = vmul.f32 %v794, 1.442695
    %v797 = vpow.pop %v796
    %v798 = vmul.f32 %v795, 1.442695
    %v799 = vpow.pop %v798
    %v800 = vsel %vm401, %v797, 0.0
    %801 = vadd.xlane.f32.xlu0 %v800
    %v802 = vpop.xlane.xlu0 %801
    %v803 = vsel %vm401, %v799, 0.0
    %804 = vadd.xlane.f32.xlu0 %v803
    %v805 = vpop.xlane.xlu0 %804
    %v806 = vrcp.pop %v802
    %v807 = vmul.f32 %v802, %v806
    %v808 = vsub.f32 1.0, %v807
    %v809 = vmul.f32 %v806, %v808
    %v810 = vadd.f32 %v806, %v809
    %vm811 = vweird.f32 %v802
    %vm812 = vweird.f32 %v806
    %vm813 = vmor %vm811, %vm812
    %v814 = vsel %vm813, %v806, %v810
    %v815 = vand.u32 2147483647, %v802
    %vm816 = vcmp.eq.f32.partialorder %v815, 8.507059e+37
    %v817 = vand.u32 %v802, 2147483648
    %v818 = vor.u32 1.1754944e-38, %v817
    %v819 = vsel %vm816, %v818, %v814
    %v820 = vrcp.pop %v805
    %v821 = vmul.f32 %v805, %v820
    %v822 = vsub.f32 1.0, %v821
    %v823 = vmul.f32 %v820, %v822
    %v824 = vadd.f32 %v820, %v823
    %vm825 = vweird.f32 %v805
    %vm826 = vweird.f32 %v820
    %vm827 = vmor %vm825, %vm826
    %v828 = vsel %vm827, %v820, %v824
    %v829 = vand.u32 2147483647, %v805
    %vm830 = vcmp.eq.f32.partialorder %v829, 8.507059e+37
    %v831 = vand.u32 %v805, 2147483648
    %v832 = vor.u32 1.1754944e-38, %v831
    %v833 = vsel %vm830, %v832, %v828
    %v834 = vmul.f32 %v797, %v819
    %v835 = vmul.f32 %v799, %v833
    %v836 = vpack.c.bf16 %v835, %v834
    %837 = vrot.lane.b32.xlu0 %v455, 32
    %v838 = vpop.permute.xlu0 %837
    %v841 = vsel %vm401, %v836, 0
    %843 = vmatpush.bf16.msra.mxu0 0
    %844 = vmatpush.bf16.msra.mxu0 0
    %845 = vmatpush.bf16.msra.mxu0 0
    %846 = vmatpush.bf16.msra.mxu0 0
    %847 = vmatpush.bf16.msra.mxu0 0
    %848 = vmatpush.bf16.msra.mxu0 0
    %849 = vmatpush.bf16.msra.mxu0 0
    %850 = vmatpush.bf16.msra.mxu0 %v838
    %851 = vmatmul.bf16.gmra.mxu0 %v841
    %v852 = vpop.f32.mrf.mxu0
    %v853 = vadd.f32 0.0, %v852
    %v854 = vpop.f32.mrf.mxu0
    %v855 = vadd.f32 0.0, %v854
    %856 = vdwg.mxu0
    %v857 = vpack.c.bf16 %v855, %v853
    %v862 = vunpack.c.l.b16 %v364
    %v863 = vunpack.c.l.b16 %v365
    %v864 = vunpack.c.l.b16 %v366
    %v865 = vunpack.c.l.b16 %v367
    %v866 = vpack.c.b16 %v863, %v862
    %v867 = vpack.c.b16 %v865, %v864
    %v871 = vsel %vm376, %v857, 0
    %873 = vmatpush.bf16.msra.mxu0 0
    %874 = vmatpush.bf16.msra.mxu0 0
    %875 = vmatpush.bf16.msra.mxu0 0
    %876 = vmatpush.bf16.msra.mxu0 0
    %877 = vmatpush.bf16.msra.mxu0 0
    %878 = vmatpush.bf16.msra.mxu0 0
    %879 = vmatpush.bf16.msra.mxu0 %v867
    %880 = vmatpush.bf16.msra.mxu0 %v866
    %881 = vmatmul.bf16.gmra.mxu0 %v871
    %v882 = vpop.f32.mrf.mxu0
    %v883 = vadd.f32 0.0, %v882
    %v884 = vpop.f32.mrf.mxu0
    %v885 = vadd.f32 0.0, %v884
    %886 = vdwg.mxu0
    %v887 = vadd.f32 %v758, %v883
    %v888 = vadd.f32 %v759, %v885
    %v889 = vperm.slane %v138, 2
    %v890 = vadd.f32 %v887, %v889
    %v891 = vadd.f32 %v888, %v889
    %v892 = vadd.f32 %v135, %v890
    %v893 = vadd.f32 %v136, %v891
    %894 = vadd.xlane.f32.xlu0 %v892
    %v895 = vpop.xlane.xlu0 %894
    %896 = vadd.xlane.f32.xlu0 %v893
    %v897 = vpop.xlane.xlu0 %896
    %v898 = vrcp.pop 128.0
    %v899 = vmul.f32 128.0, %v898
    %v900 = vsub.f32 1.0, %v899
    %v901 = vmul.f32 %v898, %v900
    %v902 = vadd.f32 %v898, %v901
    %vm903 = vweird.f32 %v898
    %v904 = vsel %vm903, %v898, %v902
    %v905 = vmul.f32 %v895, %v904
    %v906 = vmul.f32 %v897, %v904
    %v907 = vsub.f32 %v892, %v905
    %v908 = vsub.f32 %v893, %v906
    %v909 = vmul.f32 %v907, %v907
    %v910 = vmul.f32 %v908, %v908
    %911 = vadd.xlane.f32.xlu0 %v909
    %v912 = vpop.xlane.xlu0 %911
    %913 = vadd.xlane.f32.xlu0 %v910
    %v914 = vpop.xlane.xlu0 %913
    %v915 = vmul.f32 %v912, %v904
    %v916 = vmul.f32 %v914, %v904
    %v917 = vadd.f32 %v915, 1e-05
    %v918 = vadd.f32 %v916, 1e-05
    %v919 = vrsqrt.pop %v917
    %v920 = vmul.f32 %v919, %v917
    %v921 = vmul.f32 %v920, %v919
    %v922 = vmul.f32 0.5, %v921
    %v923 = vsub.f32 1.5, %v922
    %v924 = vmul.f32 %v919, %v923
    %vm925 = vweird.f32 %v917
    %vm926 = vweird.f32 %v919
    %vm927 = vmor %vm925, %vm926
    %v928 = vsel %vm927, %v919, %v924
    %v929 = vrsqrt.pop %v918
    %v930 = vmul.f32 %v929, %v918
    %v931 = vmul.f32 %v930, %v929
    %v932 = vmul.f32 0.5, %v931
    %v933 = vsub.f32 1.5, %v932
    %v934 = vmul.f32 %v929, %v933
    %vm935 = vweird.f32 %v918
    %vm936 = vweird.f32 %v929
    %vm937 = vmor %vm935, %vm936
    %v938 = vsel %vm937, %v929, %v934
    %v939 = vmul.f32 %v907, %v928
    %v940 = vmul.f32 %v908, %v938
    %v941 = vperm.slane %v138, 4
    %v942 = vmul.f32 %v939, %v941
    %v943 = vmul.f32 %v940, %v941
    %v944 = vperm.slane %v138, 5
    %v945 = vadd.f32 %v942, %v944
    %v946 = vadd.f32 %v943, %v944
    %v947 = vpack.c.bf16 %v946, %v945
    %v948 = vld [vmem:[#allocation10] sm:$0xff]
    %v949 = vld [vmem:[#allocation10 + $0x8] sm:$0xff]
    %v950 = vld [vmem:[#allocation10 + $0x10] sm:$0xff]
    %v951 = vld [vmem:[#allocation10 + $0x18] sm:$0xff]
    %v952 = vld [vmem:[#allocation10 + $0x20] sm:$0xff]
    %v953 = vld [vmem:[#allocation10 + $0x28] sm:$0xff]
    %v954 = vld [vmem:[#allocation10 + $0x30] sm:$0xff]
    %v955 = vld [vmem:[#allocation10 + $0x38] sm:$0xff]
    %v956 = vld [vmem:[#allocation10 + $0x40] sm:$0xff]
    %v957 = vld [vmem:[#allocation10 + $0x48] sm:$0xff]
    %v958 = vld [vmem:[#allocation10 + $0x50] sm:$0xff]
    %v959 = vld [vmem:[#allocation10 + $0x58] sm:$0xff]
    %v960 = vld [vmem:[#allocation10 + $0x60] sm:$0xff]
    %v961 = vld [vmem:[#allocation10 + $0x68] sm:$0xff]
    %v962 = vld [vmem:[#allocation10 + $0x70] sm:$0xff]
    %v963 = vld [vmem:[#allocation10 + $0x78] sm:$0xff]
    %v964 = vperm.slane %v138, 1
    %v965 = vperm.slane %v139, 1
    %v982 = vunpack.c.l.b16 %v948
    %v983 = vunpack.c.h.b16 %v948
    %v984 = vunpack.c.l.b16 %v949
    %v985 = vunpack.c.h.b16 %v949
    %v986 = vunpack.c.l.b16 %v950
    %v987 = vunpack.c.h.b16 %v950
    %v988 = vunpack.c.l.b16 %v951
    %v989 = vunpack.c.h.b16 %v951
    %v990 = vunpack.c.l.b16 %v952
    %v991 = vunpack.c.h.b16 %v952
    %v992 = vunpack.c.l.b16 %v953
    %v993 = vunpack.c.h.b16 %v953
    %v994 = vunpack.c.l.b16 %v954
    %v995 = vunpack.c.h.b16 %v954
    %v996 = vunpack.c.l.b16 %v955
    %v997 = vunpack.c.h.b16 %v955
    %v998 = vunpack.c.l.b16 %v956
    %v999 = vunpack.c.h.b16 %v956
    %v1000 = vunpack.c.l.b16 %v957
    %v1001 = vunpack.c.h.b16 %v957
    %v1002 = vunpack.c.l.b16 %v958
    %v1003 = vunpack.c.h.b16 %v958
    %v1004 = vunpack.c.l.b16 %v959
    %v1005 = vunpack.c.h.b16 %v959
    %v1006 = vunpack.c.l.b16 %v960
    %v1007 = vunpack.c.h.b16 %v960
    %v1008 = vunpack.c.l.b16 %v961
    %v1009 = vunpack.c.h.b16 %v961
    %v1010 = vunpack.c.l.b16 %v962
    %v1011 = vunpack.c.h.b16 %v962
    %v1012 = vunpack.c.l.b16 %v963
    %v1013 = vunpack.c.h.b16 %v963
    %v1014 = vpack.c.b16 %v984, %v982
    %v1015 = vpack.c.b16 %v985, %v983
    %v1016 = vpack.c.b16 %v988, %v986
    %v1017 = vpack.c.b16 %v989, %v987
    %v1018 = vpack.c.b16 %v992, %v990
    %v1019 = vpack.c.b16 %v993, %v991
    %v1020 = vpack.c.b16 %v996, %v994
    %v1021 = vpack.c.b16 %v997, %v995
    %v1022 = vpack.c.b16 %v1000, %v998
    %v1023 = vpack.c.b16 %v1001, %v999
    %v1024 = vpack.c.b16 %v1004, %v1002
    %v1025 = vpack.c.b16 %v1005, %v1003
    %v1026 = vpack.c.b16 %v1008, %v1006
    %v1027 = vpack.c.b16 %v1009, %v1007
    %v1028 = vpack.c.b16 %v1012, %v1010
    %v1029 = vpack.c.b16 %v1013, %v1011
    %1046 = vmatpush.bf16.msra.mxu0 %v1028
    %1047 = vmatpush.bf16.msra.mxu0 %v1026
    %1048 = vmatpush.bf16.msra.mxu0 %v1024
    %1049 = vmatpush.bf16.msra.mxu0 %v1022
    %1050 = vmatpush.bf16.msra.mxu0 %v1020
    %1051 = vmatpush.bf16.msra.mxu0 %v1018
    %1052 = vmatpush.bf16.msra.mxu0 %v1016
    %1053 = vmatpush.bf16.msra.mxu0 %v1014
    %1054 = vmatmul.bf16.gmra.mxu0 %v947
    %v1055 = vpop.f32.mrf.mxu0
    %v1056 = vadd.f32 %v964, %v1055
    %v1057 = vpop.f32.mrf.mxu0
    %v1058 = vadd.f32 %v964, %v1057
    %1059 = vdwg.mxu0
    %1060 = vmatpush.bf16.msra.mxu0 %v1029
    %1061 = vmatpush.bf16.msra.mxu0 %v1027
    %1062 = vmatpush.bf16.msra.mxu0 %v1025
    %1063 = vmatpush.bf16.msra.mxu0 %v1023
    %1064 = vmatpush.bf16.msra.mxu0 %v1021
    %1065 = vmatpush.bf16.msra.mxu0 %v1019
    %1066 = vmatpush.bf16.msra.mxu0 %v1017
    %1067 = vmatpush.bf16.msra.mxu0 %v1015
    %1068 = vmatmul.bf16.gmra.mxu0 %v947
    %v1069 = vpop.f32.mrf.mxu0
    %v1070 = vadd.f32 %v965, %v1069
    %v1071 = vpop.f32.mrf.mxu0
    %v1072 = vadd.f32 %v965, %v1071
    %1073 = vdwg.mxu0
    %v1074 = vmax.f32 %v1056, 0.0
    %v1075 = vmax.f32 %v1070, 0.0
    %v1076 = vmax.f32 %v1058, 0.0
    %v1077 = vmax.f32 %v1072, 0.0
    %v1078 = vpack.c.bf16 %v1076, %v1074
    %v1079 = vpack.c.bf16 %v1077, %v1075
    %v1080 = vld [vmem:[#allocation11] sm:$0xf]
    %v1081 = vld [vmem:[#allocation11 + $0x4] sm:$0xf]
    %v1082 = vld [vmem:[#allocation11 + $0x8] sm:$0xf]
    %v1083 = vld [vmem:[#allocation11 + $0xc] sm:$0xf]
    %v1084 = vld [vmem:[#allocation11 + $0x10] sm:$0xf]
    %v1085 = vld [vmem:[#allocation11 + $0x14] sm:$0xf]
    %v1086 = vld [vmem:[#allocation11 + $0x18] sm:$0xf]
    %v1087 = vld [vmem:[#allocation11 + $0x1c] sm:$0xf]
    %v1088 = vld [vmem:[#allocation11 + $0x20] sm:$0xf]
    %v1089 = vld [vmem:[#allocation11 + $0x24] sm:$0xf]
    %v1090 = vld [vmem:[#allocation11 + $0x28] sm:$0xf]
    %v1091 = vld [vmem:[#allocation11 + $0x2c] sm:$0xf]
    %v1092 = vld [vmem:[#allocation11 + $0x30] sm:$0xf]
    %v1093 = vld [vmem:[#allocation11 + $0x34] sm:$0xf]
    %v1094 = vld [vmem:[#allocation11 + $0x38] sm:$0xf]
    %v1095 = vld [vmem:[#allocation11 + $0x3c] sm:$0xf]
    %v1096 = vld [vmem:[#allocation11 + $0x40] sm:$0xf]
    %v1097 = vld [vmem:[#allocation11 + $0x44] sm:$0xf]
    %v1098 = vld [vmem:[#allocation11 + $0x48] sm:$0xf]
    %v1099 = vld [vmem:[#allocation11 + $0x4c] sm:$0xf]
    %v1100 = vld [vmem:[#allocation11 + $0x50] sm:$0xf]
    %v1101 = vld [vmem:[#allocation11 + $0x54] sm:$0xf]
    %v1102 = vld [vmem:[#allocation11 + $0x58] sm:$0xf]
    %v1103 = vld [vmem:[#allocation11 + $0x5c] sm:$0xf]
    %v1104 = vld [vmem:[#allocation11 + $0x60] sm:$0xf]
    %v1105 = vld [vmem:[#allocation11 + $0x64] sm:$0xf]
    %v1106 = vld [vmem:[#allocation11 + $0x68] sm:$0xf]
    %v1107 = vld [vmem:[#allocation11 + $0x6c] sm:$0xf]
    %v1108 = vld [vmem:[#allocation11 + $0x70] sm:$0xf]
    %v1109 = vld [vmem:[#allocation11 + $0x74] sm:$0xf]
    %v1110 = vld [vmem:[#allocation11 + $0x78] sm:$0xf]
    %v1111 = vld [vmem:[#allocation11 + $0x7c] sm:$0xf]
    %v1112 = vperm.slane %v138, 3
    %v1145 = vunpack.c.l.b16 %v1080
    %v1146 = vunpack.c.l.b16 %v1081
    %v1147 = vunpack.c.l.b16 %v1082
    %v1148 = vunpack.c.l.b16 %v1083
    %v1149 = vunpack.c.l.b16 %v1084
    %v1150 = vunpack.c.l.b16 %v1085
    %v1151 = vunpack.c.l.b16 %v1086
    %v1152 = vunpack.c.l.b16 %v1087
    %v1153 = vunpack.c.l.b16 %v1088
    %v1154 = vunpack.c.l.b16 %v1089
    %v1155 = vunpack.c.l.b16 %v1090
    %v1156 = vunpack.c.l.b16 %v1091
    %v1157 = vunpack.c.l.b16 %v1092
    %v1158 = vunpack.c.l.b16 %v1093
    %v1159 = vunpack.c.l.b16 %v1094
    %v1160 = vunpack.c.l.b16 %v1095
    %v1161 = vunpack.c.l.b16 %v1096
    %v1162 = vunpack.c.l.b16 %v1097
    %v1163 = vunpack.c.l.b16 %v1098
    %v1164 = vunpack.c.l.b16 %v1099
    %v1165 = vunpack.c.l.b16 %v1100
    %v1166 = vunpack.c.l.b16 %v1101
    %v1167 = vunpack.c.l.b16 %v1102
    %v1168 = vunpack.c.l.b16 %v1103
    %v1169 = vunpack.c.l.b16 %v1104
    %v1170 = vunpack.c.l.b16 %v1105
    %v1171 = vunpack.c.l.b16 %v1106
    %v1172 = vunpack.c.l.b16 %v1107
    %v1173 = vunpack.c.l.b16 %v1108
    %v1174 = vunpack.c.l.b16 %v1109
    %v1175 = vunpack.c.l.b16 %v1110
    %v1176 = vunpack.c.l.b16 %v1111
    %v1177 = vpack.c.b16 %v1146, %v1145
    %v1178 = vpack.c.b16 %v1148, %v1147
    %v1179 = vpack.c.b16 %v1150, %v1149
    %v1180 = vpack.c.b16 %v1152, %v1151
    %v1181 = vpack.c.b16 %v1154, %v1153
    %v1182 = vpack.c.b16 %v1156, %v1155
    %v1183 = vpack.c.b16 %v1158, %v1157
    %v1184 = vpack.c.b16 %v1160, %v1159
    %v1185 = vpack.c.b16 %v1162, %v1161
    %v1186 = vpack.c.b16 %v1164, %v1163
    %v1187 = vpack.c.b16 %v1166, %v1165
    %v1188 = vpack.c.b16 %v1168, %v1167
    %v1189 = vpack.c.b16 %v1170, %v1169
    %v1190 = vpack.c.b16 %v1172, %v1171
    %v1191 = vpack.c.b16 %v1174, %v1173
    %v1192 = vpack.c.b16 %v1176, %v1175
    %1209 = vmatpush.bf16.msra.mxu0 %v1184
    %1210 = vmatpush.bf16.msra.mxu0 %v1183
    %1211 = vmatpush.bf16.msra.mxu0 %v1182
    %1212 = vmatpush.bf16.msra.mxu0 %v1181
    %1213 = vmatpush.bf16.msra.mxu0 %v1180
    %1214 = vmatpush.bf16.msra.mxu0 %v1179
    %1215 = vmatpush.bf16.msra.mxu0 %v1178
    %1216 = vmatpush.bf16.msra.mxu0 %v1177
    %1217 = vmatmul.bf16.gmra.mxu0 %v1078
    %v1218 = vpop.f32.mrf.mxu0
    %v1219 = vadd.f32 %v1112, %v1218
    %v1220 = vpop.f32.mrf.mxu0
    %v1221 = vadd.f32 %v1112, %v1220
    %1222 = vdwg.mxu0
    %1223 = vmatpush.bf16.msra.mxu0 %v1192
    %1224 = vmatpush.bf16.msra.mxu0 %v1191
    %1225 = vmatpush.bf16.msra.mxu0 %v1190
    %1226 = vmatpush.bf16.msra.mxu0 %v1189
    %1227 = vmatpush.bf16.msra.mxu0 %v1188
    %1228 = vmatpush.bf16.msra.mxu0 %v1187
    %1229 = vmatpush.bf16.msra.mxu0 %v1186
    %1230 = vmatpush.bf16.msra.mxu0 %v1185
    %1231 = vmatmul.bf16.gmra.mxu0 %v1079
    %v1232 = vpop.f32.mrf.mxu0
    %v1233 = vadd.f32 %v1219, %v1232
    %v1234 = vpop.f32.mrf.mxu0
    %v1235 = vadd.f32 %v1221, %v1234
    %1236 = vdwg.mxu0
    %v1237 = vadd.f32 %v945, %v1233
    %v1238 = vadd.f32 %v946, %v1235
    %1239 = vadd.xlane.f32.xlu0 %v1237
    %v1240 = vpop.xlane.xlu0 %1239
    %1241 = vadd.xlane.f32.xlu0 %v1238
    %v1242 = vpop.xlane.xlu0 %1241
    %v1243 = vmul.f32 %v1240, %v904
    %v1244 = vmul.f32 %v1242, %v904
    %v1245 = vsub.f32 %v1237, %v1243
    %v1246 = vsub.f32 %v1238, %v1244
    %v1247 = vmul.f32 %v1245, %v1245
    %v1248 = vmul.f32 %v1246, %v1246
    %1249 = vadd.xlane.f32.xlu0 %v1247
    %v1250 = vpop.xlane.xlu0 %1249
    %1251 = vadd.xlane.f32.xlu0 %v1248
    %v1252 = vpop.xlane.xlu0 %1251
    %v1253 = vmul.f32 %v1250, %v904
    %v1254 = vmul.f32 %v1252, %v904
    %v1255 = vadd.f32 %v1253, 1e-05
    %v1256 = vadd.f32 %v1254, 1e-05
    %v1257 = vrsqrt.pop %v1255
    %v1258 = vmul.f32 %v1257, %v1255
    %v1259 = vmul.f32 %v1258, %v1257
    %v1260 = vmul.f32 0.5, %v1259
    %v1261 = vsub.f32 1.5, %v1260
    %v1262 = vmul.f32 %v1257, %v1261
    %vm1263 = vweird.f32 %v1255
    %vm1264 = vweird.f32 %v1257
    %vm1265 = vmor %vm1263, %vm1264
    %v1266 = vsel %vm1265, %v1257, %v1262
    %v1267 = vrsqrt.pop %v1256
    %v1268 = vmul.f32 %v1267, %v1256
    %v1269 = vmul.f32 %v1268, %v1267
    %v1270 = vmul.f32 0.5, %v1269
    %v1271 = vsub.f32 1.5, %v1270
    %v1272 = vmul.f32 %v1267, %v1271
    %vm1273 = vweird.f32 %v1256
    %vm1274 = vweird.f32 %v1267
    %vm1275 = vmor %vm1273, %vm1274
    %v1276 = vsel %vm1275, %v1267, %v1272
    %v1277 = vmul.f32 %v1245, %v1266
    %v1278 = vmul.f32 %v1246, %v1276
    %v1279 = vperm.slane %v138, 6
    %v1280 = vmul.f32 %v1277, %v1279
    %v1281 = vmul.f32 %v1278, %v1279
    %v1282 = vperm.slane %v138, 7
    %v1283 = vadd.f32 %v1280, %v1282
    %v1284 = vadd.f32 %v1281, %v1282
    %1285 = vst [vmem:[#allocation14] sm:$0xff] %v1283
    %1286 = vst [vmem:[#allocation14 + $0x8] sm:$0xff] %v1284
    // Predicated region
    $region58: #{tpu_custom_call.1} parent=1 // pred_check
      _
    $region59: #{tpu_custom_call.1} parent=1 // pred_check_branch
      %1288 = sbr.rel (0) target = $region61
    $region60: #{tpu_custom_call.1} parent=1 // pred_region
      %1290 = vsyncadd [#allocation4], 0
      %s1291 = sshll.u32 [#allocation14], 4
      %s1292 = int_to_ptr.vmem [resolvable:$true] %s1291
      %s1293 = sshll.u32 %s7, 4
      %s1294 = int_to_ptr.hbm [resolvable:$true] %s1293
      %1299 = dma.vmem_to_hbm [thread:$0]  %s1292, 256, %s1294, [#allocation4], 128, 128, 8
    $region61: #{tpu_custom_call.1} parent=1 // pred_fallthru
      _
    // Predicated region
    $region62: #{tpu_custom_call.1} parent=1 // pred_check
      _
    $region63: #{tpu_custom_call.1} parent=1 // pred_check_branch
      %1301 = sbr.rel (0) target = $region65
    $region64: #{tpu_custom_call.1} parent=1 // pred_region
      %1303 = dma.done [#allocation4], 256
    $region65: #{tpu_custom_call.1} parent=1 // pred_fallthru
      _
    %1304 = vsyncpa [#allocation3], 1
    %1305 = vsyncpa [#allocation6], 1
    %1306 = vsyncpa [#allocation9], 1
    %1307 = vsyncpa [#allocation12], 1
    %1308 = vsyncpa [#allocation4], 1

</llo_original>
